<compile_context>
chip_gen: v5e
topology: v5e:2x2
jax: 0.10.0
libtpu: 0.0.40
codegen_flags: <defaults>
</compile_context>

<pallas_src>
import functools
import math

import jax
import jax.numpy as jnp
from jax.experimental import pallas as pl
from jax.experimental.pallas import tpu as pltpu

# ----- static module hyper-parameters (baked into the kernel) ---------------
XMAX = 3.0 * 3.5      # self.xmax
XP = 3.0              # self.M / self.xp
R = 0.05              # self.r
T = 0.5               # self.t ; non-zero / non -1 so the full path executes.

_LANE = 128


def _round_up(v, m):
    return ((v + m - 1) // m) * m


def _softplus_beta_half(z):
    # torch.nn.Softplus(beta=0.5, threshold=20)
    return jnp.where(0.5 * z > 20.0, z, 2.0 * jnp.log(1.0 + jnp.exp(0.5 * z)))


def _default_gate_dtype():
    """bf16 elementwise/tanh on bf16-capable VPU/EUP (v6e/v7x), f32 otherwise."""
    try:
        kind = jax.devices()[0].device_kind.lower()
    except Exception:
        return jnp.float32
    if any(tag in kind for tag in ("v2", "v3", "v4", "v5")):
        return jnp.float32
    return jnp.bfloat16


# ------------------------------ kernel body ----------------------------------
def ann_kernel(x_ref, wx_ref, b_ref, wrec_ref, w4_ref, out_ref, *, gate_dtype):
    Hp = wrec_ref.shape[1]

    xT = x_ref[...]                                   # (n_input, TB), f32
    ax = jnp.abs(xT)
    xmu = jnp.mean(ax, axis=0, keepdims=True)         # (1, TB)

    if T == -1.0:
        q = jnp.ones_like(xmu)                        # forward() skips rescale
    else:
        xmax = jnp.max(ax, axis=0, keepdims=True)     # (1, TB)
        maxmu = jnp.maximum(xmu, XP)
        criterion = xmax > maxmu * (XMAX / XP)
        # safe denominator: untaken branch never selected but avoid inf.
        q = jnp.where(criterion, XMAX / jnp.maximum(xmax, 1e-30), XP / maxmu)

    # q > 0, so |q*x| - 1 == q*|x| - 1 ; reuse ax (computed once).
    xx = q * ax - 1.0                                 # (n_input, TB), f32

    def mm(w, act):
        # bf16 MXU inputs, f32 accumulation.
        return jnp.dot(w, act.astype(jnp.bfloat16),
                       preferred_element_type=jnp.float32)

    # One fused matmul for all 9 x-side projections, all 9 biases folded in
    # via a single f32 broadcast add, then one cast to the gate dtype.
    ux = (mm(wx_ref[...], xx) + b_ref[...]).astype(gate_dtype)   # (9Hp, TB)

    s0 = jnp.tanh(ux[0:Hp])

    # ---- gated block 1 ----
    sb1 = mm(wrec_ref[0:3 * Hp, :], s0).astype(gate_dtype)       # (3Hp, TB)
    g1 = jnp.tanh(ux[1 * Hp:2 * Hp] + sb1[0:Hp])
    z1 = jnp.tanh(ux[2 * Hp:3 * Hp] + sb1[Hp:2 * Hp])
    r1 = jnp.tanh(ux[3 * Hp:4 * Hp] + sb1[2 * Hp:3 * Hp])
    h1 = jnp.tanh(ux[4 * Hp:5 * Hp]
                  + mm(wrec_ref[3 * Hp:4 * Hp, :], s0 * r1).astype(gate_dtype))
    s1 = (1.0 - g1) * h1 + z1 * s0

    # ---- gated block 2 ----
    sb2 = mm(wrec_ref[4 * Hp:7 * Hp, :], s1).astype(gate_dtype)  # (3Hp, TB)
    g2 = jnp.tanh(ux[5 * Hp:6 * Hp] + sb2[0:Hp])
    z2 = jnp.tanh(ux[6 * Hp:7 * Hp] + sb2[Hp:2 * Hp])
    r2 = jnp.tanh(ux[7 * Hp:8 * Hp] + sb2[2 * Hp:3 * Hp])
    h2 = jnp.tanh(ux[8 * Hp:9 * Hp]
                  + mm(wrec_ref[7 * Hp:8 * Hp, :], s1 * r2).astype(gate_dtype))
    s2 = (1.0 - g2) * h2 + z2 * s1

    # ---- head: N=1 matmul -> VPU multiply + cross-sublane (XLU) reduce, f32.
    zhead = jnp.sum(s2.astype(jnp.float32) * w4_ref[...], axis=0, keepdims=True)
    y = 0.05 * _softplus_beta_half(zhead)             # (1, TB), f32

    if T == -1.0:
        out_ref[...] = y
        return

    # payoff + sigmoid on the rescaled input: mean(|q*x|) == q * mean(|x|).
    sval = q * xmu
    ert = math.exp(-R * T)
    tb = (1.0 - ert) * jax.nn.sigmoid(5.0 * sval - 5.0 * ert)
    lb = jnp.maximum(sval - 1.0, 0.0) + tb
    x_diff = (1.0 - q) * xmu                           # mean(|x| - q|x|)

    if T == 0.0:
        out_ref[...] = lb + x_diff
    else:
        out_ref[...] = y + lb + x_diff


# ------------------------------ wrapper ---------------------------------------
def _pack_params(p, Hp):
    """Concatenate torch-layout weights into 4 wide, Hp-padded matrices."""
    bf16 = jnp.bfloat16

    def pad_rows(w):
        return jnp.pad(w, ((0, Hp - w.shape[0]), (0, 0)))

    def pad_sq(w):
        return jnp.pad(w, ((0, Hp - w.shape[0]), (0, Hp - w.shape[1])))

    # x-side: [w0; ug1; uz1; ur1; uh1; ug2; uz2; ur2; uh2]  -> (9Hp, n_in) bf16
    wx = jnp.concatenate(
        [pad_rows(p[k]) for k in ("w0_w", "ug1_w", "uz1_w", "ur1_w", "uh1_w",
                                  "ug2_w", "uz2_w", "ur2_w", "uh2_w")],
        axis=0).astype(bf16)

    # all 9 biases concatenated in the same order (f32-exact, single ref).
    bias9 = jnp.concatenate(
        [pad_rows(p[k]) for k in ("w0_b", "wg1_b", "wz1_b", "wr1_b", "wh1_b",
                                  "wg2_b", "wz2_b", "wr2_b", "wh2_b")],
        axis=0).astype(jnp.float32)                    # (9Hp, 1)

    # recurrent side: [ws1(3Hp); wh1; ws2(3Hp); wh2]   -> (8Hp, Hp) bf16
    wrec = jnp.concatenate(
        [pad_sq(p[k]) for k in ("wg1_w", "wz1_w", "wr1_w", "wh1_w",
                                "wg2_w", "wz2_w", "wr2_w", "wh2_w")],
        axis=0).astype(bf16)

    w4 = jnp.pad(p["w4_w"].T,
                 ((0, Hp - p["w4_w"].shape[1]), (0, 0))).astype(jnp.float32)
    return wx, bias9, wrec, w4


def ann_forward(x, params, *, tile_b=2048, gate_dtype=None):
    B, n_in = x.shape
    H = params["w0_w"].shape[0]
    n_out = params["w4_w"].shape[0]
    assert n_out == 1, "original forward() broadcasting requires n_output == 1"

    # pad hidden size so every static slice is sublane-tile aligned (f32 & bf16).
    Hp = _round_up(H, 16)
    if gate_dtype is None:
        gate_dtype = _default_gate_dtype()

    wx, bias9, wrec, w4 = _pack_params(params, Hp)
    weights = (wx, bias9, wrec, w4)

    # ---- batch tiling: lane-dense, large tiles, >=2 tiles when big enough
    #      so the "parallel" grid axis shards across v7x TensorCores.
    Bp = _round_up(B, _LANE)
    TB = max(_LANE, (min(tile_b, Bp) // _LANE) * _LANE)
    if Bp // TB < 2 and Bp >= 2 * 512:
        TB = max(512, (Bp // 2) // _LANE * _LANE)
    Bp = _round_up(Bp, TB)
    num_tiles = Bp // TB

    # single relayout: transpose then pad (batch on the lane axis).
    # zero padding is safe (q -> 1 and all terms finite for all-zero rows).
    xT = jnp.pad(x.astype(jnp.float32).T, ((0, 0), (0, Bp - B)))

    weight_specs = [pl.BlockSpec(w.shape, lambda i: (0, 0)) for w in weights]
    weight_bytes = int(sum(w.size * w.dtype.itemsize for w in weights))

    # VMEM footprint estimate: double-buffered x/out tiles, resident weights,
    # f32 ux plus ~14 gate-dtype (Hp, TB) temporaries; 2x headroom, capped
    # below v7x's 64 MiB physical VMEM.
    gate_bytes = jnp.dtype(gate_dtype).itemsize
    vmem_est = (2 * n_in * TB * 4 + 2 * TB * 4 + 2 * weight_bytes
                + 9 * Hp * TB * 4 + 14 * Hp * TB * gate_bytes
                + (n_in + 4) * TB * 4)
    vmem_limit = int(min(max(2 * vmem_est, 24 << 20), 56 << 20))

    flops = 2 * Bp * (9 * Hp * n_in + 8 * Hp * Hp + Hp)
    transcendentals = Bp * (9 * Hp + 3)
    bytes_accessed = Bp * (n_in + 1) * 4 + weight_bytes

    kernel = functools.partial(ann_kernel, gate_dtype=gate_dtype)

    out = pl.pallas_call(
        kernel,
        out_shape=jax.ShapeDtypeStruct((1, Bp), jnp.float32),
        grid=(num_tiles,),
        in_specs=[pl.BlockSpec((n_in, TB), lambda i: (0, i))] + weight_specs,
        out_specs=pl.BlockSpec((1, TB), lambda i: (0, i)),
        compiler_params=pltpu.CompilerParams(
            dimension_semantics=("parallel",),
            vmem_limit_bytes=vmem_limit),
        cost_estimate=pl.CostEstimate(
            flops=int(flops),
            transcendentals=int(transcendentals),
            bytes_accessed=int(bytes_accessed)),
    )(xT, *weights)

    return out[:, :B].T                                # (B, 1)


# ----------------------- deterministic parameter init -----------------------
def _xavier(key, fan_out, fan_in):
    # xavier_uniform on a torch-layout (fan_out, fan_in) weight.
    bound = math.sqrt(6.0 / (fan_in + fan_out))
    return jax.random.uniform(key, (fan_out, fan_in), jnp.float32, -bound, bound)


def _bias(key, fan_in, n):
    # default torch nn.Linear bias init, stored as a (n, 1) column.
    bound = 1.0 / math.sqrt(fan_in)
    return jax.random.uniform(key, (n, 1), jnp.float32, -bound, bound)


def init_params(key, n_input, n_hidden, n_output):
    keys = iter(jax.random.split(key, 64))
    p = {}
    # w0: weight explicitly set to ones in the module; bias = default init.
    p["w0_w"] = jnp.ones((n_hidden, n_input), jnp.float32)
    p["w0_b"] = _bias(next(keys), n_input, n_hidden)
    for blk in ("1", "2"):
        for g in ("g", "z", "r", "h"):
            p[f"u{g}{blk}_w"] = _xavier(next(keys), n_hidden, n_input)
            p[f"w{g}{blk}_w"] = _xavier(next(keys), n_hidden, n_hidden)
            p[f"w{g}{blk}_b"] = _bias(next(keys), n_hidden, n_hidden)
    p["w4_w"] = _xavier(next(keys), n_output, n_hidden)
    return p


# ----------------------------- pure-JAX reference ---------------------------
def ann_reference(x, p):
    lin = lambda a, w: a @ w.T
    ax = jnp.abs(x)
    xmu = jnp.mean(ax, axis=-1, keepdims=True)
    if T == -1.0:
        q = jnp.ones_like(xmu)
    else:
        xmax = jnp.max(ax, axis=-1, keepdims=True)
        maxmu = jnp.maximum(xmu, XP)
        crit = xmax > maxmu * XMAX / XP
        q = jnp.where(crit, XMAX / jnp.maximum(xmax, 1e-30), XP / maxmu)
    xq = q * x
    xx = jnp.abs(xq) - 1.0
    s0 = jnp.tanh(lin(xx, p["w0_w"]) + p["w0_b"].T)
    g1 = jnp.tanh(lin(xx, p["ug1_w"]) + lin(s0, p["wg1_w"]) + p["wg1_b"].T)
    z1 = jnp.tanh(lin(xx, p["uz1_w"]) + lin(s0, p["wz1_w"]) + p["wz1_b"].T)
    r1 = jnp.tanh(lin(xx, p["ur1_w"]) + lin(s0, p["wr1_w"]) + p["wr1_b"].T)
    h1 = jnp.tanh(lin(xx, p["uh1_w"]) + lin(s0 * r1, p["wh1_w"]) + p["wh1_b"].T)
    s1 = (1.0 - g1) * h1 + z1 * s0
    g2 = jnp.tanh(lin(xx, p["ug2_w"]) + lin(s1, p["wg2_w"]) + p["wg2_b"].T)
    z2 = jnp.tanh(lin(xx, p["uz2_w"]) + lin(s1, p["wz2_w"]) + p["wz2_b"].T)
    r2 = jnp.tanh(lin(xx, p["ur2_w"]) + lin(s1, p["wr2_w"]) + p["wr2_b"].T)
    h2 = jnp.tanh(lin(xx, p["uh2_w"]) + lin(s1 * r2, p["wh2_w"]) + p["wh2_b"].T)
    s2 = (1.0 - g2) * h2 + z2 * s1
    y = 0.05 * _softplus_beta_half(lin(s2, p["w4_w"]))

    sval = jnp.mean(jnp.abs(xq), axis=-1, keepdims=True)
    ert = math.exp(-R * T)
    tb = (1.0 - ert) * jax.nn.sigmoid(5.0 * sval - 5.0 * ert)
    lb = jnp.maximum(sval - 1.0, 0.0) + tb

    if T == -1.0:
        return y
    f = lb if T == 0.0 else y + lb
    x_diff = jnp.mean(ax - q * ax, axis=-1, keepdims=True)
    return f + x_diff


if __name__ == "__main__":
    B, n_input, n_hidden, n_output = 8, 4, 32, 1
    key = jax.random.PRNGKey(0)
    kx, kp = jax.random.split(key)
    x = 2.0 * jax.random.normal(kx, (B, n_input), jnp.float32)
    params = init_params(kp, n_input, n_hidden, n_output)

    out = ann_forward(x, params)
    jax.block_until_ready(out)

    ref = ann_reference(x, params)
    assert out.shape == (B, n_output)
    # tolerance covers bf16 MXU operands (f32 accumulation) plus bf16 gate /
    # tanh math on bf16-capable chips; the payoff / x_diff path stays f32.
    assert jnp.allclose(out, ref, rtol=3e-2, atol=3e-2), (out, ref)
    print("KERNEL_OK")
</pallas_src>

<mosaic_0001>
module attributes {stable_mosaic.version = 11 : i64} {
  func.func @ann_kernel(%arg0: i32, %arg1: memref<4x128xf32, #tpu.memory_space<vmem>>, %arg2: memref<288x4xbf16, #tpu.memory_space<vmem>>, %arg3: memref<288x1xf32, #tpu.memory_space<vmem>>, %arg4: memref<256x32xbf16, #tpu.memory_space<vmem>>, %arg5: memref<32x1xf32, #tpu.memory_space<vmem>>, %arg6: memref<1x128xf32, #tpu.memory_space<vmem>>) attributes {dimension_semantics = [#tpu.dimension_semantics<parallel>], iteration_bounds = array<i64: 1>, scalar_prefetch = 0 : i64, scratch_operands = 0 : i64, tpu.core_type = #tpu.core_type<tc>, window_params = [{transform_indices = @transform_0, window_bounds = array<i64: 4, 128>}, {pipeline_mode = #tpu.pipeline_mode<synchronous>, transform_indices = @transform_1, window_bounds = array<i64: 288, 4>}, {pipeline_mode = #tpu.pipeline_mode<synchronous>, transform_indices = @transform_2, window_bounds = array<i64: 288, 1>}, {pipeline_mode = #tpu.pipeline_mode<synchronous>, transform_indices = @transform_3, window_bounds = array<i64: 256, 32>}, {pipeline_mode = #tpu.pipeline_mode<synchronous>, transform_indices = @transform_4, window_bounds = array<i64: 32, 1>}, {transform_indices = @transform_5, window_bounds = array<i64: 1, 128>}]} {
    %c0 = arith.constant 0 : index
    %c0_0 = arith.constant 0 : index
    %0 = vector.load %arg1[%c0, %c0_0] : memref<4x128xf32, #tpu.memory_space<vmem>>, vector<4x128xf32>
    %1 = math.absf %0 : vector<4x128xf32>
    %cst = arith.constant dense<0.000000e+00> : vector<128xf32>
    %2 = vector.multi_reduction <add>, %1, %cst [0] : vector<4x128xf32> to vector<128xf32>
    %3 = vector.shape_cast %2 : vector<128xf32> to vector<1x128xf32>
    %cst_1 = arith.constant 4.000000e+00 : f32
    %4 = vector.broadcast %cst_1 : f32 to vector<1x128xf32>
    %5 = arith.divf %3, %4 : vector<1x128xf32>
    %cst_2 = arith.constant dense<0xFF800000> : vector<128xf32>
    %6 = vector.multi_reduction <maximumf>, %1, %cst_2 [0] : vector<4x128xf32> to vector<128xf32>
    %7 = vector.shape_cast %6 : vector<128xf32> to vector<1x128xf32>
    %cst_3 = arith.constant 3.000000e+00 : f32
    %8 = vector.broadcast %cst_3 : f32 to vector<1x128xf32>
    %9 = arith.maximumf %5, %8 : vector<1x128xf32>
    %cst_4 = arith.constant 3.500000e+00 : f32
    %10 = vector.broadcast %cst_4 : f32 to vector<1x128xf32>
    %11 = arith.mulf %9, %10 : vector<1x128xf32>
    %12 = arith.cmpf ogt, %7, %11 : vector<1x128xf32>
    %cst_5 = arith.constant 1.000000e-30 : f32
    %13 = vector.broadcast %cst_5 : f32 to vector<1x128xf32>
    %14 = arith.maximumf %7, %13 : vector<1x128xf32>
    %cst_6 = arith.constant 1.050000e+01 : f32
    %15 = vector.broadcast %cst_6 : f32 to vector<1x128xf32>
    %16 = arith.divf %15, %14 : vector<1x128xf32>
    %cst_7 = arith.constant 3.000000e+00 : f32
    %17 = vector.broadcast %cst_7 : f32 to vector<1x128xf32>
    %18 = arith.divf %17, %9 : vector<1x128xf32>
    %19 = arith.select %12, %16, %18 : vector<1x128xi1>, vector<1x128xf32>
    %20 = vector.broadcast %19 : vector<1x128xf32> to vector<4x128xf32>
    %21 = arith.mulf %20, %1 : vector<4x128xf32>
    %cst_8 = arith.constant 1.000000e+00 : f32
    %22 = vector.broadcast %cst_8 : f32 to vector<4x128xf32>
    %23 = arith.subf %21, %22 : vector<4x128xf32>
    %c0_9 = arith.constant 0 : index
    %c0_10 = arith.constant 0 : index
    %24 = vector.load %arg2[%c0_9, %c0_10] : memref<288x4xbf16, #tpu.memory_space<vmem>>, vector<288x4xbf16>
    %25 = arith.truncf %23 : vector<4x128xf32> to vector<4x128xbf16>
    %cst_11 = arith.constant dense<0.000000e+00> : vector<288x128xf32>
    %26 = tpu.matmul %24, %25, %cst_11 {dimension_numbers = #tpu.dot_dimension_numbers<[1], [0], [0], [1], [0, 0, 1, 1], [], []>} : vector<288x4xbf16>, vector<4x128xbf16>, vector<288x128xf32> -> vector<288x128xf32>
    %c0_12 = arith.constant 0 : index
    %c0_13 = arith.constant 0 : index
    %27 = vector.load %arg3[%c0_12, %c0_13] : memref<288x1xf32, #tpu.memory_space<vmem>>, vector<288x1xf32>
    %28 = vector.broadcast %27 : vector<288x1xf32> to vector<288x128xf32>
    %29 = arith.addf %26, %28 : vector<288x128xf32>
    %30 = arith.truncf %29 : vector<288x128xf32> to vector<288x128xbf16>
    %31 = vector.extract_strided_slice %30 {offsets = [0, 0], sizes = [32, 128], strides = [1, 1]} : vector<288x128xbf16> to vector<32x128xbf16>
    %32 = math.tanh %31 : vector<32x128xbf16>
    %c0_14 = arith.constant 0 : index
    %c0_15 = arith.constant 0 : index
    %33 = vector.load %arg4[%c0_14, %c0_15] : memref<256x32xbf16, #tpu.memory_space<vmem>>, vector<96x32xbf16>
    %cst_16 = arith.constant dense<0.000000e+00> : vector<96x128xf32>
    %34 = tpu.matmul %33, %32, %cst_16 {dimension_numbers = #tpu.dot_dimension_numbers<[1], [0], [0], [1], [0, 0, 1, 1], [], []>} : vector<96x32xbf16>, vector<32x128xbf16>, vector<96x128xf32> -> vector<96x128xf32>
    %35 = arith.truncf %34 : vector<96x128xf32> to vector<96x128xbf16>
    %36 = vector.extract_strided_slice %30 {offsets = [32, 0], sizes = [32, 128], strides = [1, 1]} : vector<288x128xbf16> to vector<32x128xbf16>
    %37 = vector.extract_strided_slice %35 {offsets = [0, 0], sizes = [32, 128], strides = [1, 1]} : vector<96x128xbf16> to vector<32x128xbf16>
    %38 = arith.addf %36, %37 : vector<32x128xbf16>
    %39 = math.tanh %38 : vector<32x128xbf16>
    %40 = vector.extract_strided_slice %30 {offsets = [64, 0], sizes = [32, 128], strides = [1, 1]} : vector<288x128xbf16> to vector<32x128xbf16>
    %41 = vector.extract_strided_slice %35 {offsets = [32, 0], sizes = [32, 128], strides = [1, 1]} : vector<96x128xbf16> to vector<32x128xbf16>
    %42 = arith.addf %40, %41 : vector<32x128xbf16>
    %43 = math.tanh %42 : vector<32x128xbf16>
    %44 = vector.extract_strided_slice %30 {offsets = [96, 0], sizes = [32, 128], strides = [1, 1]} : vector<288x128xbf16> to vector<32x128xbf16>
    %45 = vector.extract_strided_slice %35 {offsets = [64, 0], sizes = [32, 128], strides = [1, 1]} : vector<96x128xbf16> to vector<32x128xbf16>
    %46 = arith.addf %44, %45 : vector<32x128xbf16>
    %47 = math.tanh %46 : vector<32x128xbf16>
    %48 = vector.extract_strided_slice %30 {offsets = [128, 0], sizes = [32, 128], strides = [1, 1]} : vector<288x128xbf16> to vector<32x128xbf16>
    %c96 = arith.constant 96 : index
    %c0_17 = arith.constant 0 : index
    %49 = vector.load %arg4[%c96, %c0_17] : memref<256x32xbf16, #tpu.memory_space<vmem>>, vector<32x32xbf16>
    %50 = arith.mulf %32, %47 : vector<32x128xbf16>
    %cst_18 = arith.constant dense<0.000000e+00> : vector<32x128xf32>
    %51 = tpu.matmul %49, %50, %cst_18 {dimension_numbers = #tpu.dot_dimension_numbers<[1], [0], [0], [1], [0, 0, 1, 1], [], []>} : vector<32x32xbf16>, vector<32x128xbf16>, vector<32x128xf32> -> vector<32x128xf32>
    %52 = arith.truncf %51 : vector<32x128xf32> to vector<32x128xbf16>
    %53 = arith.addf %48, %52 : vector<32x128xbf16>
    %54 = math.tanh %53 : vector<32x128xbf16>
    %cst_19 = arith.constant 1.000000e+00 : bf16
    %55 = vector.broadcast %cst_19 : bf16 to vector<32x128xbf16>
    %56 = arith.subf %55, %39 : vector<32x128xbf16>
    %57 = arith.mulf %56, %54 : vector<32x128xbf16>
    %58 = arith.mulf %43, %32 : vector<32x128xbf16>
    %59 = arith.addf %57, %58 : vector<32x128xbf16>
    %c128 = arith.constant 128 : index
    %c0_20 = arith.constant 0 : index
    %60 = vector.load %arg4[%c128, %c0_20] : memref<256x32xbf16, #tpu.memory_space<vmem>>, vector<96x32xbf16>
    %cst_21 = arith.constant dense<0.000000e+00> : vector<96x128xf32>
    %61 = tpu.matmul %60, %59, %cst_21 {dimension_numbers = #tpu.dot_dimension_numbers<[1], [0], [0], [1], [0, 0, 1, 1], [], []>} : vector<96x32xbf16>, vector<32x128xbf16>, vector<96x128xf32> -> vector<96x128xf32>
    %62 = arith.truncf %61 : vector<96x128xf32> to vector<96x128xbf16>
    %63 = vector.extract_strided_slice %30 {offsets = [160, 0], sizes = [32, 128], strides = [1, 1]} : vector<288x128xbf16> to vector<32x128xbf16>
    %64 = vector.extract_strided_slice %62 {offsets = [0, 0], sizes = [32, 128], strides = [1, 1]} : vector<96x128xbf16> to vector<32x128xbf16>
    %65 = arith.addf %63, %64 : vector<32x128xbf16>
    %66 = math.tanh %65 : vector<32x128xbf16>
    %67 = vector.extract_strided_slice %30 {offsets = [192, 0], sizes = [32, 128], strides = [1, 1]} : vector<288x128xbf16> to vector<32x128xbf16>
    %68 = vector.extract_strided_slice %62 {offsets = [32, 0], sizes = [32, 128], strides = [1, 1]} : vector<96x128xbf16> to vector<32x128xbf16>
    %69 = arith.addf %67, %68 : vector<32x128xbf16>
    %70 = math.tanh %69 : vector<32x128xbf16>
    %71 = vector.extract_strided_slice %30 {offsets = [224, 0], sizes = [32, 128], strides = [1, 1]} : vector<288x128xbf16> to vector<32x128xbf16>
    %72 = vector.extract_strided_slice %62 {offsets = [64, 0], sizes = [32, 128], strides = [1, 1]} : vector<96x128xbf16> to vector<32x128xbf16>
    %73 = arith.addf %71, %72 : vector<32x128xbf16>
    %74 = math.tanh %73 : vector<32x128xbf16>
    %75 = vector.extract_strided_slice %30 {offsets = [256, 0], sizes = [32, 128], strides = [1, 1]} : vector<288x128xbf16> to vector<32x128xbf16>
    %c224 = arith.constant 224 : index
    %c0_22 = arith.constant 0 : index
    %76 = vector.load %arg4[%c224, %c0_22] : memref<256x32xbf16, #tpu.memory_space<vmem>>, vector<32x32xbf16>
    %77 = arith.mulf %59, %74 : vector<32x128xbf16>
    %cst_23 = arith.constant dense<0.000000e+00> : vector<32x128xf32>
    %78 = tpu.matmul %76, %77, %cst_23 {dimension_numbers = #tpu.dot_dimension_numbers<[1], [0], [0], [1], [0, 0, 1, 1], [], []>} : vector<32x32xbf16>, vector<32x128xbf16>, vector<32x128xf32> -> vector<32x128xf32>
    %79 = arith.truncf %78 : vector<32x128xf32> to vector<32x128xbf16>
    %80 = arith.addf %75, %79 : vector<32x128xbf16>
    %81 = math.tanh %80 : vector<32x128xbf16>
    %cst_24 = arith.constant 1.000000e+00 : bf16
    %82 = vector.broadcast %cst_24 : bf16 to vector<32x128xbf16>
    %83 = arith.subf %82, %66 : vector<32x128xbf16>
    %84 = arith.mulf %83, %81 : vector<32x128xbf16>
    %85 = arith.mulf %70, %59 : vector<32x128xbf16>
    %86 = arith.addf %84, %85 : vector<32x128xbf16>
    %87 = arith.extf %86 : vector<32x128xbf16> to vector<32x128xf32>
    %c0_25 = arith.constant 0 : index
    %c0_26 = arith.constant 0 : index
    %88 = vector.load %arg5[%c0_25, %c0_26] : memref<32x1xf32, #tpu.memory_space<vmem>>, vector<32x1xf32>
    %89 = vector.broadcast %88 : vector<32x1xf32> to vector<32x128xf32>
    %90 = arith.mulf %87, %89 : vector<32x128xf32>
    %cst_27 = arith.constant dense<0.000000e+00> : vector<128xf32>
    %91 = vector.multi_reduction <add>, %90, %cst_27 [0] : vector<32x128xf32> to vector<128xf32>
    %92 = vector.shape_cast %91 : vector<128xf32> to vector<1x128xf32>
    %cst_28 = arith.constant 5.000000e-01 : f32
    %93 = vector.broadcast %cst_28 : f32 to vector<1x128xf32>
    %94 = arith.mulf %93, %92 : vector<1x128xf32>
    %cst_29 = arith.constant 2.000000e+01 : f32
    %95 = vector.broadcast %cst_29 : f32 to vector<1x128xf32>
    %96 = arith.cmpf ogt, %94, %95 : vector<1x128xf32>
    %cst_30 = arith.constant 5.000000e-01 : f32
    %97 = vector.broadcast %cst_30 : f32 to vector<1x128xf32>
    %98 = arith.mulf %97, %92 : vector<1x128xf32>
    %99 = math.exp %98 : vector<1x128xf32>
    %cst_31 = arith.constant 1.000000e+00 : f32
    %100 = vector.broadcast %cst_31 : f32 to vector<1x128xf32>
    %101 = arith.addf %100, %99 : vector<1x128xf32>
    %102 = math.log %101 : vector<1x128xf32>
    %cst_32 = arith.constant 2.000000e+00 : f32
    %103 = vector.broadcast %cst_32 : f32 to vector<1x128xf32>
    %104 = arith.mulf %103, %102 : vector<1x128xf32>
    %105 = arith.select %96, %92, %104 : vector<1x128xi1>, vector<1x128xf32>
    %cst_33 = arith.constant 5.000000e-02 : f32
    %106 = vector.broadcast %cst_33 : f32 to vector<1x128xf32>
    %107 = arith.mulf %106, %105 : vector<1x128xf32>
    %108 = arith.mulf %19, %5 : vector<1x128xf32>
    %cst_34 = arith.constant 5.000000e+00 : f32
    %109 = vector.broadcast %cst_34 : f32 to vector<1x128xf32>
    %110 = arith.mulf %109, %108 : vector<1x128xf32>
    %cst_35 = arith.constant 4.87654972 : f32
    %111 = vector.broadcast %cst_35 : f32 to vector<1x128xf32>
    %112 = arith.subf %110, %111 : vector<1x128xf32>
    %113 = arith.negf %112 : vector<1x128xf32>
    %114 = math.exp %113 : vector<1x128xf32>
    %cst_36 = arith.constant 1.000000e+00 : f32
    %115 = vector.broadcast %cst_36 : f32 to vector<1x128xf32>
    %116 = arith.addf %115, %114 : vector<1x128xf32>
    %117 = arith.divf %115, %116 : vector<1x128xf32>
    %cst_37 = arith.constant 0.0246900879 : f32
    %118 = vector.broadcast %cst_37 : f32 to vector<1x128xf32>
    %119 = arith.mulf %118, %117 : vector<1x128xf32>
    %cst_38 = arith.constant 1.000000e+00 : f32
    %120 = vector.broadcast %cst_38 : f32 to vector<1x128xf32>
    %121 = arith.subf %108, %120 : vector<1x128xf32>
    %cst_39 = arith.constant 0.000000e+00 : f32
    %122 = vector.broadcast %cst_39 : f32 to vector<1x128xf32>
    %123 = arith.maximumf %121, %122 : vector<1x128xf32>
    %124 = arith.addf %123, %119 : vector<1x128xf32>
    %cst_40 = arith.constant 1.000000e+00 : f32
    %125 = vector.broadcast %cst_40 : f32 to vector<1x128xf32>
    %126 = arith.subf %125, %19 : vector<1x128xf32>
    %127 = arith.mulf %126, %5 : vector<1x128xf32>
    %128 = arith.addf %107, %124 : vector<1x128xf32>
    %129 = arith.addf %128, %127 : vector<1x128xf32>
    %c0_41 = arith.constant 0 : index
    %c0_42 = arith.constant 0 : index
    %130 = vector.load %arg6[%c0_41, %c0_42] : memref<1x128xf32, #tpu.memory_space<vmem>>, vector<1x128xf32>
    tpu.vector_store %arg6[%c0_41, %c0_42], %129 {strides = array<i32>} : memref<1x128xf32, #tpu.memory_space<vmem>>, vector<1x128xf32>,
    return
  }
  func.func @transform_0(%arg0: i32) -> (i32, i32) {
    %c0_i32 = arith.constant 0 : i32
    %c0_i32_0 = arith.constant 0 : i32
    return %c0_i32, %arg0 : i32, i32
  }
  func.func @transform_1(%arg0: i32) -> (i32, i32) {
    %c0_i32 = arith.constant 0 : i32
    %c0_i32_0 = arith.constant 0 : i32
    %c0_i32_1 = arith.constant 0 : i32
    return %c0_i32, %c0_i32_0 : i32, i32
  }
  func.func @transform_2(%arg0: i32) -> (i32, i32) {
    %c0_i32 = arith.constant 0 : i32
    %c0_i32_0 = arith.constant 0 : i32
    %c0_i32_1 = arith.constant 0 : i32
    return %c0_i32, %c0_i32_0 : i32, i32
  }
  func.func @transform_3(%arg0: i32) -> (i32, i32) {
    %c0_i32 = arith.constant 0 : i32
    %c0_i32_0 = arith.constant 0 : i32
    %c0_i32_1 = arith.constant 0 : i32
    return %c0_i32, %c0_i32_0 : i32, i32
  }
  func.func @transform_4(%arg0: i32) -> (i32, i32) {
    %c0_i32 = arith.constant 0 : i32
    %c0_i32_0 = arith.constant 0 : i32
    %c0_i32_1 = arith.constant 0 : i32
    return %c0_i32, %c0_i32_0 : i32, i32
  }
  func.func @transform_5(%arg0: i32) -> (i32, i32) {
    %c0_i32 = arith.constant 0 : i32
    %c0_i32_0 = arith.constant 0 : i32
    return %c0_i32, %arg0 : i32, i32
  }
}

</mosaic_0001>

<llo_original>
// kernel: tpu_custom_call.1
$region0: #{tpu_custom_call.1}
  #allocation0 [shape = 'u32[]', space=smem, size = 0x4, offset = 0x4, fixed_abs, tag = 'smem constant byte address 0x4 - core index']
  #allocation1 [shape = 'u32[72,128]{1,0:T(1,128)}', space=vmem, size = 0x9000, scoped, tag = 'internal scratch']
  %s0 = inlined_call_operand.vmem [shape: f32[4,128], index: 0, kind: input, shape index: {}]
  %s1 = inlined_call_operand.vmem [shape: bf16[288,4], index: 1, kind: input, shape index: {}]
  %s2 = inlined_call_operand.vmem [shape: f32[288,1], index: 2, kind: input, shape index: {}]
  %s3 = inlined_call_operand.vmem [shape: bf16[256,32], index: 3, kind: input, shape index: {}]
  %s4 = inlined_call_operand.vmem [shape: f32[32,1], index: 4, kind: input, shape index: {}]
  %s5 = inlined_call_operand.hbm [shape: f32[1,128], index: 5, kind: output, shape index: {}]
  %s6 = sld [smem:[#allocation0]]
  $region30: #{tpu_custom_call.1} parent=0
    _
  %s8 = ssub.s32 1, %s6
  %s9 = scalar_select 0, %s8, %s6
  $region1: #{tpu_custom_call.1} parent=0
    #allocation2 [shape = 'u8[512]{0}', space=vmem, size = 0x400, scoped, tag = 'output window, operand 0, single buffered']
    #allocation3 [shape = 's32[1]{0}', space=sflag, size = 0x4, scoped, tag = 'scoped memory for tpu_custom_call.1']
    %10 = vsyncpa [#allocation3], 0
    // Predicated region
    $region2: #{tpu_custom_call.1} parent=1 // pred_check
      _
    $region3: #{tpu_custom_call.1} parent=1 // pred_check_branch
      %12 = sbr.rel (0) target = $region5
    $region4: #{tpu_custom_call.1} parent=1 // pred_region
      _
    $region5: #{tpu_custom_call.1} parent=1 // pred_fallthru
      _
    // Predicated region
    $region6: #{tpu_custom_call.1} parent=1 // pred_check
      _
    $region7: #{tpu_custom_call.1} parent=1 // pred_check_branch
      %14 = sbr.rel (0) target = $region9
    $region8: #{tpu_custom_call.1} parent=1 // pred_region
      _
    $region9: #{tpu_custom_call.1} parent=1 // pred_fallthru
      _
    // Predicated region
    $region10: #{tpu_custom_call.1} parent=1 // pred_check
      _
    $region11: #{tpu_custom_call.1} parent=1 // pred_check_branch
      %16 = sbr.rel (0) target = $region13
    $region12: #{tpu_custom_call.1} parent=1 // pred_region
      _
    $region13: #{tpu_custom_call.1} parent=1 // pred_fallthru
      _
    // Predicated region
    $region14: #{tpu_custom_call.1} parent=1 // pred_check
      _
    $region15: #{tpu_custom_call.1} parent=1 // pred_check_branch
      %18 = sbr.rel (0) target = $region17
    $region16: #{tpu_custom_call.1} parent=1 // pred_region
      _
    $region17: #{tpu_custom_call.1} parent=1 // pred_fallthru
      _
    // Predicated region
    $region18: #{tpu_custom_call.1} parent=1 // pred_check
      _
    $region19: #{tpu_custom_call.1} parent=1 // pred_check_branch
      %20 = sbr.rel (0) target = $region21
    $region20: #{tpu_custom_call.1} parent=1 // pred_region
      _
    $region21: #{tpu_custom_call.1} parent=1 // pred_fallthru
      _
    %v22 = vld [vmem:[%s0] sm:$0xf]
    %v23 = vand.u32 2147483647, %v22
    %vm24 = vcmask 1043456
    %v25 = vsel %vm24, %v23, 0.0
    %v26 = vrot.slane %v25, 4
    %v27 = vadd.f32 %v25, %v26
    %v28 = vrot.slane %v27, 2
    %v29 = vadd.f32 %v27, %v28
    %v30 = vrot.slane %v29, 1
    %v31 = vadd.f32 %v29, %v30
    %v32 = vrcp.pop 4.0
    %v33 = vmul.f32 4.0, %v32
    %v34 = vsub.f32 1.0, %v33
    %v35 = vmul.f32 %v32, %v34
    %v36 = vadd.f32 %v32, %v35
    %vm37 = vweird.f32 %v32
    %v38 = vsel %vm37, %v32, %v36
    %v39 = vmul.f32 %v31, %v38
    %v40 = vsel %vm24, %v23, -inf
    %v41 = vrot.slane %v40, 4
    %v42 = vmax.f32 %v40, %v41
    %v43 = vrot.slane %v42, 2
    %v44 = vmax.f32 %v42, %v43
    %v45 = vrot.slane %v44, 1
    %v46 = vmax.f32 %v44, %v45
    %v47 = vmax.f32 %v39, 3.0
    %v48 = vmul.f32 %v47, 3.5
    %vm49 = vcmp.gt.f32.partialorder %v46, %v48
    %v50 = vmax.f32 %v46, 1e-30
    %v51 = vrcp.pop %v50
    %v52 = vmul.f32 %v50, %v51
    %v53 = vsub.f32 1.0, %v52
    %v54 = vmul.f32 %v51, %v53
    %v55 = vadd.f32 %v51, %v54
    %vm56 = vweird.f32 %v50
    %vm57 = vweird.f32 %v51
    %vm58 = vmor %vm56, %vm57
    %v59 = vsel %vm58, %v51, %v55
    %v60 = vand.u32 2147483647, %v50
    %vm61 = vcmp.eq.f32.partialorder %v60, 8.507059e+37
    %v62 = vand.u32 %v50, 2147483648
    %v63 = vor.u32 1.1754944e-38, %v62
    %v64 = vsel %vm61, %v63, %v59
    %v65 = vmul.f32 10.5, %v64
    %v66 = vrcp.pop %v47
    %v67 = vmul.f32 %v47, %v66
    %v68 = vsub.f32 1.0, %v67
    %v69 = vmul.f32 %v66, %v68
    %v70 = vadd.f32 %v66, %v69
    %vm71 = vweird.f32 %v47
    %vm72 = vweird.f32 %v66
    %vm73 = vmor %vm71, %vm72
    %v74 = vsel %vm73, %v66, %v70
    %v75 = vand.u32 2147483647, %v47
    %vm76 = vcmp.eq.f32.partialorder %v75, 8.507059e+37
    %v77 = vand.u32 %v47, 2147483648
    %v78 = vor.u32 1.1754944e-38, %v77
    %v79 = vsel %vm76, %v78, %v74
    %v80 = vmul.f32 3.0, %v79
    %v81 = vsel %vm49, %v65, %v80
    %v82 = vmul.f32 %v81, %v23
    %v83 = vsub.f32 %v82, 1.0
    %v84 = vld [vmem:[%s1] sm:$0xf]
    %v85 = vld [vmem:[%s1 + $0x4] sm:$0xf]
    %v86 = vld [vmem:[%s1 + $0x8] sm:$0xf]
    %v87 = vld [vmem:[%s1 + $0xc] sm:$0xf]
    %v88 = vld [vmem:[%s1 + $0x10] sm:$0xf]
    %v89 = vld [vmem:[%s1 + $0x14] sm:$0xf]
    %v90 = vld [vmem:[%s1 + $0x18] sm:$0xf]
    %v91 = vld [vmem:[%s1 + $0x1c] sm:$0xf]
    %v92 = vld [vmem:[%s1 + $0x20] sm:$0xf]
    %v93 = vld [vmem:[%s1 + $0x24] sm:$0xf]
    %v94 = vld [vmem:[%s1 + $0x28] sm:$0xf]
    %v95 = vld [vmem:[%s1 + $0x2c] sm:$0xf]
    %v96 = vld [vmem:[%s1 + $0x30] sm:$0xf]
    %v97 = vld [vmem:[%s1 + $0x34] sm:$0xf]
    %v98 = vld [vmem:[%s1 + $0x38] sm:$0xf]
    %v99 = vld [vmem:[%s1 + $0x3c] sm:$0xf]
    %v100 = vld [vmem:[%s1 + $0x40] sm:$0xf]
    %v101 = vld [vmem:[%s1 + $0x44] sm:$0xf]
    %v102 = vld [vmem:[%s1 + $0x48] sm:$0xf]
    %v103 = vld [vmem:[%s1 + $0x4c] sm:$0xf]
    %v104 = vld [vmem:[%s1 + $0x50] sm:$0xf]
    %v105 = vld [vmem:[%s1 + $0x54] sm:$0xf]
    %v106 = vld [vmem:[%s1 + $0x58] sm:$0xf]
    %v107 = vld [vmem:[%s1 + $0x5c] sm:$0xf]
    %v108 = vld [vmem:[%s1 + $0x60] sm:$0xf]
    %v109 = vld [vmem:[%s1 + $0x64] sm:$0xf]
    %v110 = vld [vmem:[%s1 + $0x68] sm:$0xf]
    %v111 = vld [vmem:[%s1 + $0x6c] sm:$0xf]
    %v112 = vld [vmem:[%s1 + $0x70] sm:$0xf]
    %v113 = vld [vmem:[%s1 + $0x74] sm:$0xf]
    %v114 = vld [vmem:[%s1 + $0x78] sm:$0xf]
    %v115 = vld [vmem:[%s1 + $0x7c] sm:$0xf]
    %v116 = vld [vmem:[%s1 + $0x80] sm:$0xf]
    %v117 = vld [vmem:[%s1 + $0x84] sm:$0xf]
    %v118 = vld [vmem:[%s1 + $0x88] sm:$0xf]
    %v119 = vld [vmem:[%s1 + $0x8c] sm:$0xf]
    %v120 = vpack.c.bf16 %v83, %v83
    %v121 = vld [vmem:[%s2] sm:$0xff]
    %v122 = vld [vmem:[%s2 + $0x8] sm:$0xff]
    %v123 = vld [vmem:[%s2 + $0x10] sm:$0xff]
    %v124 = vld [vmem:[%s2 + $0x18] sm:$0xff]
    %v125 = vld [vmem:[%s2 + $0x20] sm:$0xff]
    %v126 = vld [vmem:[%s2 + $0x28] sm:$0xff]
    %v127 = vld [vmem:[%s2 + $0x30] sm:$0xff]
    %v128 = vld [vmem:[%s2 + $0x38] sm:$0xff]
    %v129 = vld [vmem:[%s2 + $0x40] sm:$0xff]
    %v130 = vld [vmem:[%s2 + $0x48] sm:$0xff]
    %v131 = vld [vmem:[%s2 + $0x50] sm:$0xff]
    %v132 = vld [vmem:[%s2 + $0x58] sm:$0xff]
    %v133 = vld [vmem:[%s2 + $0x60] sm:$0xff]
    %v134 = vld [vmem:[%s2 + $0x68] sm:$0xff]
    %v135 = vld [vmem:[%s2 + $0x70] sm:$0xff]
    %v136 = vld [vmem:[%s2 + $0x78] sm:$0xff]
    %v137 = vld [vmem:[%s2 + $0x80] sm:$0xff]
    %v138 = vld [vmem:[%s2 + $0x88] sm:$0xff]
    %v139 = vld [vmem:[%s2 + $0x90] sm:$0xff]
    %v140 = vld [vmem:[%s2 + $0x98] sm:$0xff]
    %v141 = vld [vmem:[%s2 + $0xa0] sm:$0xff]
    %v142 = vld [vmem:[%s2 + $0xa8] sm:$0xff]
    %v143 = vld [vmem:[%s2 + $0xb0] sm:$0xff]
    %v144 = vld [vmem:[%s2 + $0xb8] sm:$0xff]
    %v145 = vld [vmem:[%s2 + $0xc0] sm:$0xff]
    %v146 = vld [vmem:[%s2 + $0xc8] sm:$0xff]
    %v147 = vld [vmem:[%s2 + $0xd0] sm:$0xff]
    %v148 = vld [vmem:[%s2 + $0xd8] sm:$0xff]
    %v149 = vld [vmem:[%s2 + $0xe0] sm:$0xff]
    %v150 = vld [vmem:[%s2 + $0xe8] sm:$0xff]
    %v151 = vld [vmem:[%s2 + $0xf0] sm:$0xff]
    %v152 = vld [vmem:[%s2 + $0xf8] sm:$0xff]
    %v153 = vld [vmem:[%s2 + $0x100] sm:$0xff]
    %v154 = vld [vmem:[%s2 + $0x108] sm:$0xff]
    %v155 = vld [vmem:[%s2 + $0x110] sm:$0xff]
    %v156 = vld [vmem:[%s2 + $0x118] sm:$0xff]
    %158 = vset.pattern.permute.xlu0 0
    %159 = vperm.xlu0 %158, %v121
    %v160 = vpop.permute.xlu0 %159
    %163 = vset.pattern.permute.xlu0 0
    %164 = vperm.xlu0 %163, %v122
    %v165 = vpop.permute.xlu0 %164
    %168 = vset.pattern.permute.xlu0 0
    %169 = vperm.xlu0 %168, %v123
    %v170 = vpop.permute.xlu0 %169
    %173 = vset.pattern.permute.xlu0 0
    %174 = vperm.xlu0 %173, %v124
    %v175 = vpop.permute.xlu0 %174
    %178 = vset.pattern.permute.xlu0 0
    %179 = vperm.xlu0 %178, %v125
    %v180 = vpop.permute.xlu0 %179
    %183 = vset.pattern.permute.xlu0 0
    %184 = vperm.xlu0 %183, %v126
    %v185 = vpop.permute.xlu0 %184
    %188 = vset.pattern.permute.xlu0 0
    %189 = vperm.xlu0 %188, %v127
    %v190 = vpop.permute.xlu0 %189
    %193 = vset.pattern.permute.xlu0 0
    %194 = vperm.xlu0 %193, %v128
    %v195 = vpop.permute.xlu0 %194
    %198 = vset.pattern.permute.xlu0 0
    %199 = vperm.xlu0 %198, %v129
    %v200 = vpop.permute.xlu0 %199
    %203 = vset.pattern.permute.xlu0 0
    %204 = vperm.xlu0 %203, %v130
    %v205 = vpop.permute.xlu0 %204
    %208 = vset.pattern.permute.xlu0 0
    %209 = vperm.xlu0 %208, %v131
    %v210 = vpop.permute.xlu0 %209
    %213 = vset.pattern.permute.xlu0 0
    %214 = vperm.xlu0 %213, %v132
    %v215 = vpop.permute.xlu0 %214
    %218 = vset.pattern.permute.xlu0 0
    %219 = vperm.xlu0 %218, %v133
    %v220 = vpop.permute.xlu0 %219
    %223 = vset.pattern.permute.xlu0 0
    %224 = vperm.xlu0 %223, %v134
    %v225 = vpop.permute.xlu0 %224
    %228 = vset.pattern.permute.xlu0 0
    %229 = vperm.xlu0 %228, %v135
    %v230 = vpop.permute.xlu0 %229
    %233 = vset.pattern.permute.xlu0 0
    %234 = vperm.xlu0 %233, %v136
    %v235 = vpop.permute.xlu0 %234
    %238 = vset.pattern.permute.xlu0 0
    %239 = vperm.xlu0 %238, %v137
    %v240 = vpop.permute.xlu0 %239
    %243 = vset.pattern.permute.xlu0 0
    %244 = vperm.xlu0 %243, %v138
    %v245 = vpop.permute.xlu0 %244
    %248 = vset.pattern.permute.xlu0 0
    %249 = vperm.xlu0 %248, %v139
    %v250 = vpop.permute.xlu0 %249
    %253 = vset.pattern.permute.xlu0 0
    %254 = vperm.xlu0 %253, %v140
    %v255 = vpop.permute.xlu0 %254
    %258 = vset.pattern.permute.xlu0 0
    %259 = vperm.xlu0 %258, %v141
    %v260 = vpop.permute.xlu0 %259
    %263 = vset.pattern.permute.xlu0 0
    %264 = vperm.xlu0 %263, %v142
    %v265 = vpop.permute.xlu0 %264
    %268 = vset.pattern.permute.xlu0 0
    %269 = vperm.xlu0 %268, %v143
    %v270 = vpop.permute.xlu0 %269
    %273 = vset.pattern.permute.xlu0 0
    %274 = vperm.xlu0 %273, %v144
    %v275 = vpop.permute.xlu0 %274
    %278 = vset.pattern.permute.xlu0 0
    %279 = vperm.xlu0 %278, %v145
    %v280 = vpop.permute.xlu0 %279
    %283 = vset.pattern.permute.xlu0 0
    %284 = vperm.xlu0 %283, %v146
    %v285 = vpop.permute.xlu0 %284
    %288 = vset.pattern.permute.xlu0 0
    %289 = vperm.xlu0 %288, %v147
    %v290 = vpop.permute.xlu0 %289
    %293 = vset.pattern.permute.xlu0 0
    %294 = vperm.xlu0 %293, %v148
    %v295 = vpop.permute.xlu0 %294
    %298 = vset.pattern.permute.xlu0 0
    %299 = vperm.xlu0 %298, %v149
    %v300 = vpop.permute.xlu0 %299
    %303 = vset.pattern.permute.xlu0 0
    %304 = vperm.xlu0 %303, %v150
    %v305 = vpop.permute.xlu0 %304
    %308 = vset.pattern.permute.xlu0 0
    %309 = vperm.xlu0 %308, %v151
    %v310 = vpop.permute.xlu0 %309
    %313 = vset.pattern.permute.xlu0 0
    %314 = vperm.xlu0 %313, %v152
    %v315 = vpop.permute.xlu0 %314
    %318 = vset.pattern.permute.xlu0 0
    %319 = vperm.xlu0 %318, %v153
    %v320 = vpop.permute.xlu0 %319
    %323 = vset.pattern.permute.xlu0 0
    %324 = vperm.xlu0 %323, %v154
    %v325 = vpop.permute.xlu0 %324
    %328 = vset.pattern.permute.xlu0 0
    %329 = vperm.xlu0 %328, %v155
    %v330 = vpop.permute.xlu0 %329
    %333 = vset.pattern.permute.xlu0 0
    %334 = vperm.xlu0 %333, %v156
    %v335 = vpop.permute.xlu0 %334
    %v373 = vunpack.c.l.b16 %v84
    %v374 = vunpack.c.l.b16 %v85
    %v375 = vunpack.c.l.b16 %v86
    %v376 = vunpack.c.l.b16 %v87
    %v377 = vunpack.c.l.b16 %v88
    %v378 = vunpack.c.l.b16 %v89
    %v379 = vunpack.c.l.b16 %v90
    %v380 = vunpack.c.l.b16 %v91
    %v381 = vunpack.c.l.b16 %v92
    %v382 = vunpack.c.l.b16 %v93
    %v383 = vunpack.c.l.b16 %v94
    %v384 = vunpack.c.l.b16 %v95
    %v385 = vunpack.c.l.b16 %v96
    %v386 = vunpack.c.l.b16 %v97
    %v387 = vunpack.c.l.b16 %v98
    %v388 = vunpack.c.l.b16 %v99
    %v389 = vunpack.c.l.b16 %v100
    %v390 = vunpack.c.l.b16 %v101
    %v391 = vunpack.c.l.b16 %v102
    %v392 = vunpack.c.l.b16 %v103
    %v393 = vunpack.c.l.b16 %v104
    %v394 = vunpack.c.l.b16 %v105
    %v395 = vunpack.c.l.b16 %v106
    %v396 = vunpack.c.l.b16 %v107
    %v397 = vunpack.c.l.b16 %v108
    %v398 = vunpack.c.l.b16 %v109
    %v399 = vunpack.c.l.b16 %v110
    %v400 = vunpack.c.l.b16 %v111
    %v401 = vunpack.c.l.b16 %v112
    %v402 = vunpack.c.l.b16 %v113
    %v403 = vunpack.c.l.b16 %v114
    %v404 = vunpack.c.l.b16 %v115
    %v405 = vunpack.c.l.b16 %v116
    %v406 = vunpack.c.l.b16 %v117
    %v407 = vunpack.c.l.b16 %v118
    %v408 = vunpack.c.l.b16 %v119
    %v409 = vpack.c.b16 %v374, %v373
    %v410 = vpack.c.b16 %v376, %v375
    %v411 = vpack.c.b16 %v378, %v377
    %v412 = vpack.c.b16 %v380, %v379
    %v413 = vpack.c.b16 %v382, %v381
    %v414 = vpack.c.b16 %v384, %v383
    %v415 = vpack.c.b16 %v386, %v385
    %v416 = vpack.c.b16 %v388, %v387
    %v417 = vpack.c.b16 %v390, %v389
    %v418 = vpack.c.b16 %v392, %v391
    %v419 = vpack.c.b16 %v394, %v393
    %v420 = vpack.c.b16 %v396, %v395
    %v421 = vpack.c.b16 %v398, %v397
    %v422 = vpack.c.b16 %v400, %v399
    %v423 = vpack.c.b16 %v402, %v401
    %v424 = vpack.c.b16 %v404, %v403
    %v425 = vpack.c.b16 %v406, %v405
    %v426 = vpack.c.b16 %v408, %v407
    %vm427 = vcmask 31744
    %v429 = vsel %vm427, %v409, 0
    %v432 = vsel %vm427, %v410, 0
    %v435 = vsel %vm427, %v411, 0
    %v438 = vsel %vm427, %v412, 0
    %v441 = vsel %vm427, %v413, 0
    %v444 = vsel %vm427, %v414, 0
    %v447 = vsel %vm427, %v415, 0
    %v450 = vsel %vm427, %v416, 0
    %v453 = vsel %vm427, %v417, 0
    %v456 = vsel %vm427, %v418, 0
    %v459 = vsel %vm427, %v419, 0
    %v462 = vsel %vm427, %v420, 0
    %v465 = vsel %vm427, %v421, 0
    %v468 = vsel %vm427, %v422, 0
    %v471 = vsel %vm427, %v423, 0
    %v474 = vsel %vm427, %v424, 0
    %v477 = vsel %vm427, %v425, 0
    %v480 = vsel %vm427, %v426, 0
    %vm482 = vcmask 1041408
    %v484 = vsel %vm482, %v120, 0
    %486 = vmatpush.bf16.msra.mxu0 0
    %487 = vmatpush.bf16.msra.mxu0 0
    %488 = vmatpush.bf16.msra.mxu0 0
    %489 = vmatpush.bf16.msra.mxu0 0
    %490 = vmatpush.bf16.msra.mxu0 0
    %491 = vmatpush.bf16.msra.mxu0 0
    %492 = vmatpush.bf16.msra.mxu0 0
    %493 = vmatpush.bf16.msra.mxu0 %v484
    %494 = vmatmul.bf16.gmra.mxu0 %v429
    %v495 = vpop.f32.mrf.mxu0
    %v496 = vadd.f32 %v160, %v495
    %v497 = vpop.f32.mrf.mxu0
    %v498 = vadd.f32 %v165, %v497
    %499 = vmatmul.bf16.gmra.mxu0 %v432
    %v500 = vpop.f32.mrf.mxu0
    %v501 = vadd.f32 %v170, %v500
    %v502 = vpop.f32.mrf.mxu0
    %v503 = vadd.f32 %v175, %v502
    %504 = vmatmul.bf16.gmra.mxu0 %v435
    %v505 = vpop.f32.mrf.mxu0
    %v506 = vadd.f32 %v180, %v505
    %v507 = vpop.f32.mrf.mxu0
    %v508 = vadd.f32 %v185, %v507
    %509 = vmatmul.bf16.gmra.mxu0 %v438
    %v510 = vpop.f32.mrf.mxu0
    %v511 = vadd.f32 %v190, %v510
    %v512 = vpop.f32.mrf.mxu0
    %v513 = vadd.f32 %v195, %v512
    %514 = vmatmul.bf16.gmra.mxu0 %v441
    %v515 = vpop.f32.mrf.mxu0
    %v516 = vadd.f32 %v200, %v515
    %v517 = vpop.f32.mrf.mxu0
    %v518 = vadd.f32 %v205, %v517
    %519 = vmatmul.bf16.gmra.mxu0 %v444
    %v520 = vpop.f32.mrf.mxu0
    %v521 = vadd.f32 %v210, %v520
    %v522 = vpop.f32.mrf.mxu0
    %v523 = vadd.f32 %v215, %v522
    %524 = vmatmul.bf16.gmra.mxu0 %v447
    %v525 = vpop.f32.mrf.mxu0
    %v526 = vadd.f32 %v220, %v525
    %v527 = vpop.f32.mrf.mxu0
    %v528 = vadd.f32 %v225, %v527
    %529 = vmatmul.bf16.gmra.mxu0 %v450
    %v530 = vpop.f32.mrf.mxu0
    %v531 = vadd.f32 %v230, %v530
    %v532 = vpop.f32.mrf.mxu0
    %v533 = vadd.f32 %v235, %v532
    %534 = vmatmul.bf16.gmra.mxu0 %v453
    %v535 = vpop.f32.mrf.mxu0
    %v536 = vadd.f32 %v240, %v535
    %v537 = vpop.f32.mrf.mxu0
    %v538 = vadd.f32 %v245, %v537
    %539 = vmatmul.bf16.gmra.mxu0 %v456
    %v540 = vpop.f32.mrf.mxu0
    %v541 = vadd.f32 %v250, %v540
    %v542 = vpop.f32.mrf.mxu0
    %v543 = vadd.f32 %v255, %v542
    %544 = vmatmul.bf16.gmra.mxu0 %v459
    %v545 = vpop.f32.mrf.mxu0
    %v546 = vadd.f32 %v260, %v545
    %v547 = vpop.f32.mrf.mxu0
    %v548 = vadd.f32 %v265, %v547
    %549 = vmatmul.bf16.gmra.mxu0 %v462
    %v550 = vpop.f32.mrf.mxu0
    %v551 = vadd.f32 %v270, %v550
    %v552 = vpop.f32.mrf.mxu0
    %v553 = vadd.f32 %v275, %v552
    %554 = vmatmul.bf16.gmra.mxu0 %v465
    %v555 = vpop.f32.mrf.mxu0
    %v556 = vadd.f32 %v280, %v555
    %v557 = vpop.f32.mrf.mxu0
    %v558 = vadd.f32 %v285, %v557
    %559 = vmatmul.bf16.gmra.mxu0 %v468
    %v560 = vpop.f32.mrf.mxu0
    %v561 = vadd.f32 %v290, %v560
    %v562 = vpop.f32.mrf.mxu0
    %v563 = vadd.f32 %v295, %v562
    %564 = vmatmul.bf16.gmra.mxu0 %v471
    %v565 = vpop.f32.mrf.mxu0
    %v566 = vadd.f32 %v300, %v565
    %v567 = vpop.f32.mrf.mxu0
    %v568 = vadd.f32 %v305, %v567
    %569 = vmatmul.bf16.gmra.mxu0 %v474
    %v570 = vpop.f32.mrf.mxu0
    %v571 = vadd.f32 %v310, %v570
    %v572 = vpop.f32.mrf.mxu0
    %v573 = vadd.f32 %v315, %v572
    %574 = vmatmul.bf16.gmra.mxu0 %v477
    %v575 = vpop.f32.mrf.mxu0
    %v576 = vadd.f32 %v320, %v575
    %v577 = vpop.f32.mrf.mxu0
    %v578 = vadd.f32 %v325, %v577
    %579 = vmatmul.bf16.gmra.mxu0 %v480
    %v580 = vpop.f32.mrf.mxu0
    %v581 = vadd.f32 %v330, %v580
    %v582 = vpop.f32.mrf.mxu0
    %v583 = vadd.f32 %v335, %v582
    %584 = vdwg.mxu0
    %v585 = vpack.c.bf16 %v496, %v496
    %v586 = vpack.c.bf16 %v498, %v498
    %v587 = vpack.c.bf16 %v501, %v501
    %v588 = vpack.c.bf16 %v503, %v503
    %v589 = vpack.c.bf16 %v506, %v506
    %v590 = vpack.c.bf16 %v508, %v508
    %v591 = vpack.c.bf16 %v511, %v511
    %v592 = vpack.c.bf16 %v513, %v513
    %v593 = vpack.c.bf16 %v516, %v516
    %v594 = vpack.c.bf16 %v518, %v518
    %v595 = vpack.c.bf16 %v521, %v521
    %v596 = vpack.c.bf16 %v523, %v523
    %v597 = vpack.c.bf16 %v526, %v526
    %v598 = vpack.c.bf16 %v528, %v528
    %v599 = vpack.c.bf16 %v531, %v531
    %v600 = vpack.c.bf16 %v533, %v533
    %v601 = vpack.c.bf16 %v536, %v536
    %v602 = vpack.c.bf16 %v538, %v538
    %v603 = vpack.c.bf16 %v541, %v541
    %v604 = vpack.c.bf16 %v543, %v543
    %v605 = vpack.c.bf16 %v546, %v546
    %v606 = vpack.c.bf16 %v548, %v548
    %v607 = vpack.c.bf16 %v551, %v551
    %v608 = vpack.c.bf16 %v553, %v553
    %v609 = vpack.c.bf16 %v556, %v556
    %v610 = vpack.c.bf16 %v558, %v558
    %v611 = vpack.c.bf16 %v561, %v561
    %v612 = vpack.c.bf16 %v563, %v563
    %v613 = vpack.c.bf16 %v566, %v566
    %v614 = vpack.c.bf16 %v568, %v568
    %v615 = vpack.c.bf16 %v571, %v571
    %v616 = vpack.c.bf16 %v573, %v573
    %v617 = vpack.c.bf16 %v576, %v576
    %v618 = vpack.c.bf16 %v578, %v578
    %v619 = vpack.c.bf16 %v581, %v581
    %v620 = vpack.c.bf16 %v583, %v583
    %v621 = vunpack.c.l.bf16 %v585
    %v622 = vunpack.c.l.bf16 %v586
    %v623 = vunpack.c.l.bf16 %v587
    %v624 = vunpack.c.l.bf16 %v588
    %v625 = vtanh.pop %v621
    %v626 = vtanh.pop %v622
    %v627 = vtanh.pop %v623
    %v628 = vtanh.pop %v624
    %v629 = vpack.c.bf16 %v625, %v625
    %v630 = vpack.c.bf16 %v626, %v626
    %v631 = vpack.c.bf16 %v627, %v627
    %v632 = vpack.c.bf16 %v628, %v628
    %v633 = vld [vmem:[%s3] sm:$0xf]
    %v634 = vld [vmem:[%s3 + $0x4] sm:$0xf]
    %v635 = vld [vmem:[%s3 + $0x8] sm:$0xf]
    %v636 = vld [vmem:[%s3 + $0xc] sm:$0xf]
    %v637 = vld [vmem:[%s3 + $0x10] sm:$0xf]
    %v638 = vld [vmem:[%s3 + $0x14] sm:$0xf]
    %v639 = vld [vmem:[%s3 + $0x18] sm:$0xf]
    %v640 = vld [vmem:[%s3 + $0x1c] sm:$0xf]
    %v641 = vld [vmem:[%s3 + $0x20] sm:$0xf]
    %v642 = vld [vmem:[%s3 + $0x24] sm:$0xf]
    %v643 = vld [vmem:[%s3 + $0x28] sm:$0xf]
    %v644 = vld [vmem:[%s3 + $0x2c] sm:$0xf]
    %v657 = vunpack.c.l.b16 %v633
    %v658 = vunpack.c.l.b16 %v634
    %v659 = vunpack.c.l.b16 %v635
    %v660 = vunpack.c.l.b16 %v636
    %v661 = vunpack.c.l.b16 %v637
    %v662 = vunpack.c.l.b16 %v638
    %v663 = vunpack.c.l.b16 %v639
    %v664 = vunpack.c.l.b16 %v640
    %v665 = vunpack.c.l.b16 %v641
    %v666 = vunpack.c.l.b16 %v642
    %v667 = vunpack.c.l.b16 %v643
    %v668 = vunpack.c.l.b16 %v644
    %v669 = vpack.c.b16 %v658, %v657
    %v670 = vpack.c.b16 %v660, %v659
    %v671 = vpack.c.b16 %v662, %v661
    %v672 = vpack.c.b16 %v664, %v663
    %v673 = vpack.c.b16 %v666, %v665
    %v674 = vpack.c.b16 %v668, %v667
    %v679 = vunpack.c.l.b16 %v629
    %v680 = vunpack.c.l.b16 %v630
    %v681 = vunpack.c.l.b16 %v631
    %v682 = vunpack.c.l.b16 %v632
    %v683 = vpack.c.b16 %v680, %v679
    %v684 = vpack.c.b16 %v682, %v681
    %vm687 = vcmask 261120
    %v689 = vsel %vm687, %v669, 0
    %v692 = vsel %vm687, %v670, 0
    %v695 = vsel %vm687, %v671, 0
    %v698 = vsel %vm687, %v672, 0
    %v701 = vsel %vm687, %v673, 0
    %v704 = vsel %vm687, %v674, 0
    %706 = vmatpush.bf16.msra.mxu0 0
    %707 = vmatpush.bf16.msra.mxu0 0
    %708 = vmatpush.bf16.msra.mxu0 0
    %709 = vmatpush.bf16.msra.mxu0 0
    %710 = vmatpush.bf16.msra.mxu0 0
    %711 = vmatpush.bf16.msra.mxu0 0
    %712 = vmatpush.bf16.msra.mxu0 %v684
    %713 = vmatpush.bf16.msra.mxu0 %v683
    %714 = vmatmul.bf16.gmra.mxu0 %v689
    %v715 = vpop.f32.mrf.mxu0
    %v716 = vadd.f32 0.0, %v715
    %v717 = vpop.f32.mrf.mxu0
    %v718 = vadd.f32 0.0, %v717
    %719 = vmatmul.bf16.gmra.mxu0 %v692
    %v720 = vpop.f32.mrf.mxu0
    %v721 = vadd.f32 0.0, %v720
    %v722 = vpop.f32.mrf.mxu0
    %v723 = vadd.f32 0.0, %v722
    %724 = vmatmul.bf16.gmra.mxu0 %v695
    %v725 = vpop.f32.mrf.mxu0
    %v726 = vadd.f32 0.0, %v725
    %v727 = vpop.f32.mrf.mxu0
    %v728 = vadd.f32 0.0, %v727
    %729 = vmatmul.bf16.gmra.mxu0 %v698
    %v730 = vpop.f32.mrf.mxu0
    %v731 = vadd.f32 0.0, %v730
    %v732 = vpop.f32.mrf.mxu0
    %v733 = vadd.f32 0.0, %v732
    %734 = vmatmul.bf16.gmra.mxu0 %v701
    %v735 = vpop.f32.mrf.mxu0
    %v736 = vadd.f32 0.0, %v735
    %v737 = vpop.f32.mrf.mxu0
    %v738 = vadd.f32 0.0, %v737
    %739 = vmatmul.bf16.gmra.mxu0 %v704
    %v740 = vpop.f32.mrf.mxu0
    %v741 = vadd.f32 0.0, %v740
    %v742 = vpop.f32.mrf.mxu0
    %v743 = vadd.f32 0.0, %v742
    %744 = vdwg.mxu0
    %v745 = vpack.c.bf16 %v716, %v716
    %v746 = vpack.c.bf16 %v718, %v718
    %v747 = vpack.c.bf16 %v721, %v721
    %v748 = vpack.c.bf16 %v723, %v723
    %v749 = vpack.c.bf16 %v726, %v726
    %v750 = vpack.c.bf16 %v728, %v728
    %v751 = vpack.c.bf16 %v731, %v731
    %v752 = vpack.c.bf16 %v733, %v733
    %v753 = vpack.c.bf16 %v736, %v736
    %v754 = vpack.c.bf16 %v738, %v738
    %v755 = vpack.c.bf16 %v741, %v741
    %v756 = vpack.c.bf16 %v743, %v743
    %v757 = vunpack.c.l.bf16 %v589
    %v758 = vunpack.c.l.bf16 %v590
    %v759 = vunpack.c.l.bf16 %v591
    %v760 = vunpack.c.l.bf16 %v592
    %v761 = vunpack.c.l.bf16 %v745
    %v762 = vunpack.c.l.bf16 %v746
    %v763 = vunpack.c.l.bf16 %v747
    %v764 = vunpack.c.l.bf16 %v748
    %v765 = vadd.f32 %v757, %v761
    %v766 = vadd.f32 %v758, %v762
    %v767 = vadd.f32 %v759, %v763
    %v768 = vadd.f32 %v760, %v764
    %v769 = vpack.c.bf16 %v765, %v765
    %v770 = vpack.c.bf16 %v766, %v766
    %v771 = vpack.c.bf16 %v767, %v767
    %v772 = vpack.c.bf16 %v768, %v768
    %v773 = vunpack.c.l.bf16 %v769
    %v774 = vunpack.c.l.bf16 %v770
    %v775 = vunpack.c.l.bf16 %v771
    %v776 = vunpack.c.l.bf16 %v772
    %v777 = vtanh.pop %v773
    %v778 = vtanh.pop %v774
    %v779 = vtanh.pop %v775
    %v780 = vtanh.pop %v776
    %v781 = vpack.c.bf16 %v777, %v777
    %v782 = vpack.c.bf16 %v778, %v778
    %v783 = vpack.c.bf16 %v779, %v779
    %v784 = vpack.c.bf16 %v780, %v780
    %v785 = vunpack.c.l.bf16 %v593
    %v786 = vunpack.c.l.bf16 %v594
    %v787 = vunpack.c.l.bf16 %v595
    %v788 = vunpack.c.l.bf16 %v596
    %v789 = vunpack.c.l.bf16 %v749
    %v790 = vunpack.c.l.bf16 %v750
    %v791 = vunpack.c.l.bf16 %v751
    %v792 = vunpack.c.l.bf16 %v752
    %v793 = vadd.f32 %v785, %v789
    %v794 = vadd.f32 %v786, %v790
    %v795 = vadd.f32 %v787, %v791
    %v796 = vadd.f32 %v788, %v792
    %v797 = vpack.c.bf16 %v793, %v793
    %v798 = vpack.c.bf16 %v794, %v794
    %v799 = vpack.c.bf16 %v795, %v795
    %v800 = vpack.c.bf16 %v796, %v796
    %v801 = vunpack.c.l.bf16 %v797
    %v802 = vunpack.c.l.bf16 %v798
    %v803 = vunpack.c.l.bf16 %v799
    %v804 = vunpack.c.l.bf16 %v800
    %v805 = vtanh.pop %v801
    %v806 = vtanh.pop %v802
    %v807 = vtanh.pop %v803
    %v808 = vtanh.pop %v804
    %v809 = vpack.c.bf16 %v805, %v805
    %v810 = vpack.c.bf16 %v806, %v806
    %v811 = vpack.c.bf16 %v807, %v807
    %v812 = vpack.c.bf16 %v808, %v808
    %v813 = vunpack.c.l.bf16 %v597
    %v814 = vunpack.c.l.bf16 %v598
    %v815 = vunpack.c.l.bf16 %v599
    %v816 = vunpack.c.l.bf16 %v600
    %v817 = vunpack.c.l.bf16 %v753
    %v818 = vunpack.c.l.bf16 %v754
    %v819 = vunpack.c.l.bf16 %v755
    %v820 = vunpack.c.l.bf16 %v756
    %v821 = vadd.f32 %v813, %v817
    %v822 = vadd.f32 %v814, %v818
    %v823 = vadd.f32 %v815, %v819
    %v824 = vadd.f32 %v816, %v820
    %v825 = vpack.c.bf16 %v821, %v821
    %v826 = vpack.c.bf16 %v822, %v822
    %v827 = vpack.c.bf16 %v823, %v823
    %v828 = vpack.c.bf16 %v824, %v824
    %v829 = vunpack.c.l.bf16 %v825
    %v830 = vunpack.c.l.bf16 %v826
    %v831 = vunpack.c.l.bf16 %v827
    %v832 = vunpack.c.l.bf16 %v828
    %v833 = vtanh.pop %v829
    %v834 = vtanh.pop %v830
    %v835 = vtanh.pop %v831
    %v836 = vtanh.pop %v832
    %v837 = vpack.c.bf16 %v833, %v833
    %v838 = vpack.c.bf16 %v834, %v834
    %v839 = vpack.c.bf16 %v835, %v835
    %v840 = vpack.c.bf16 %v836, %v836
    %v841 = vld [vmem:[%s3 + $0x30] sm:$0xf]
    %v842 = vld [vmem:[%s3 + $0x34] sm:$0xf]
    %v843 = vld [vmem:[%s3 + $0x38] sm:$0xf]
    %v844 = vld [vmem:[%s3 + $0x3c] sm:$0xf]
    %v845 = vunpack.c.l.bf16 %v629
    %v846 = vunpack.c.l.bf16 %v630
    %v847 = vunpack.c.l.bf16 %v631
    %v848 = vunpack.c.l.bf16 %v632
    %v849 = vunpack.c.l.bf16 %v837
    %v850 = vunpack.c.l.bf16 %v838
    %v851 = vunpack.c.l.bf16 %v839
    %v852 = vunpack.c.l.bf16 %v840
    %v853 = vmul.f32 %v845, %v849
    %v854 = vmul.f32 %v846, %v850
    %v855 = vmul.f32 %v847, %v851
    %v856 = vmul.f32 %v848, %v852
    %v857 = vpack.c.bf16 %v854, %v853
    %v858 = vpack.c.bf16 %v856, %v855
    %v863 = vunpack.c.l.b16 %v841
    %v864 = vunpack.c.l.b16 %v842
    %v865 = vunpack.c.l.b16 %v843
    %v866 = vunpack.c.l.b16 %v844
    %v867 = vpack.c.b16 %v864, %v863
    %v868 = vpack.c.b16 %v866, %v865
    %v870 = vsel %vm687, %v867, 0
    %v873 = vsel %vm687, %v868, 0
    %875 = vmatpush.bf16.msra.mxu0 0
    %876 = vmatpush.bf16.msra.mxu0 0
    %877 = vmatpush.bf16.msra.mxu0 0
    %878 = vmatpush.bf16.msra.mxu0 0
    %879 = vmatpush.bf16.msra.mxu0 0
    %880 = vmatpush.bf16.msra.mxu0 0
    %881 = vmatpush.bf16.msra.mxu0 %v858
    %882 = vmatpush.bf16.msra.mxu0 %v857
    %883 = vmatmul.bf16.gmra.mxu0 %v870
    %v884 = vpop.f32.mrf.mxu0
    %v885 = vadd.f32 0.0, %v884
    %v886 = vpop.f32.mrf.mxu0
    %v887 = vadd.f32 0.0, %v886
    %888 = vmatmul.bf16.gmra.mxu0 %v873
    %v889 = vpop.f32.mrf.mxu0
    %v890 = vadd.f32 0.0, %v889
    %v891 = vpop.f32.mrf.mxu0
    %v892 = vadd.f32 0.0, %v891
    %893 = vdwg.mxu0
    %v894 = vpack.c.bf16 %v885, %v885
    %v895 = vpack.c.bf16 %v887, %v887
    %v896 = vpack.c.bf16 %v890, %v890
    %v897 = vpack.c.bf16 %v892, %v892
    %v898 = vunpack.c.l.bf16 %v601
    %v899 = vunpack.c.l.bf16 %v602
    %v900 = vunpack.c.l.bf16 %v603
    %v901 = vunpack.c.l.bf16 %v604
    %v902 = vunpack.c.l.bf16 %v894
    %v903 = vunpack.c.l.bf16 %v895
    %v904 = vunpack.c.l.bf16 %v896
    %v905 = vunpack.c.l.bf16 %v897
    %v906 = vadd.f32 %v898, %v902
    %v907 = vadd.f32 %v899, %v903
    %v908 = vadd.f32 %v900, %v904
    %v909 = vadd.f32 %v901, %v905
    %v910 = vpack.c.bf16 %v906, %v906
    %v911 = vpack.c.bf16 %v907, %v907
    %v912 = vpack.c.bf16 %v908, %v908
    %v913 = vpack.c.bf16 %v909, %v909
    %v914 = vunpack.c.l.bf16 %v910
    %v915 = vunpack.c.l.bf16 %v911
    %v916 = vunpack.c.l.bf16 %v912
    %v917 = vunpack.c.l.bf16 %v913
    %v918 = vtanh.pop %v914
    %v919 = vtanh.pop %v915
    %v920 = vtanh.pop %v916
    %v921 = vtanh.pop %v917
    %v922 = vpack.c.bf16 %v918, %v918
    %v923 = vpack.c.bf16 %v919, %v919
    %v924 = vpack.c.bf16 %v920, %v920
    %v925 = vpack.c.bf16 %v921, %v921
    %v926 = vunpack.c.l.bf16 %v781
    %v927 = vunpack.c.l.bf16 %v782
    %v928 = vunpack.c.l.bf16 %v783
    %v929 = vunpack.c.l.bf16 %v784
    %v930 = vsub.f32 1.0, %v926
    %v931 = vsub.f32 1.0, %v927
    %v932 = vsub.f32 1.0, %v928
    %v933 = vsub.f32 1.0, %v929
    %v934 = vpack.c.bf16 %v930, %v930
    %v935 = vpack.c.bf16 %v931, %v931
    %v936 = vpack.c.bf16 %v932, %v932
    %v937 = vpack.c.bf16 %v933, %v933
    %v938 = vunpack.c.l.bf16 %v934
    %v939 = vunpack.c.l.bf16 %v935
    %v940 = vunpack.c.l.bf16 %v936
    %v941 = vunpack.c.l.bf16 %v937
    %v942 = vunpack.c.l.bf16 %v922
    %v943 = vunpack.c.l.bf16 %v923
    %v944 = vunpack.c.l.bf16 %v924
    %v945 = vunpack.c.l.bf16 %v925
    %v946 = vmul.f32 %v938, %v942
    %v947 = vmul.f32 %v939, %v943
    %v948 = vmul.f32 %v940, %v944
    %v949 = vmul.f32 %v941, %v945
    %v950 = vpack.c.bf16 %v946, %v946
    %v951 = vpack.c.bf16 %v947, %v947
    %v952 = vpack.c.bf16 %v948, %v948
    %v953 = vpack.c.bf16 %v949, %v949
    %v954 = vunpack.c.l.bf16 %v809
    %v955 = vunpack.c.l.bf16 %v810
    %v956 = vunpack.c.l.bf16 %v811
    %v957 = vunpack.c.l.bf16 %v812
    %v958 = vmul.f32 %v954, %v845
    %v959 = vmul.f32 %v955, %v846
    %v960 = vmul.f32 %v956, %v847
    %v961 = vmul.f32 %v957, %v848
    %v962 = vpack.c.bf16 %v958, %v958
    %v963 = vpack.c.bf16 %v959, %v959
    %v964 = vpack.c.bf16 %v960, %v960
    %v965 = vpack.c.bf16 %v961, %v961
    %v966 = vunpack.c.l.bf16 %v950
    %v967 = vunpack.c.l.bf16 %v951
    %v968 = vunpack.c.l.bf16 %v952
    %v969 = vunpack.c.l.bf16 %v953
    %v970 = vunpack.c.l.bf16 %v962
    %v971 = vunpack.c.l.bf16 %v963
    %v972 = vunpack.c.l.bf16 %v964
    %v973 = vunpack.c.l.bf16 %v965
    %v974 = vadd.f32 %v966, %v970
    %v975 = vadd.f32 %v967, %v971
    %v976 = vadd.f32 %v968, %v972
    %v977 = vadd.f32 %v969, %v973
    %v978 = vpack.c.bf16 %v974, %v974
    %v979 = vpack.c.bf16 %v975, %v975
    %v980 = vpack.c.bf16 %v976, %v976
    %v981 = vpack.c.bf16 %v977, %v977
    %v982 = vld [vmem:[%s3 + $0x40] sm:$0xf]
    %v983 = vld [vmem:[%s3 + $0x44] sm:$0xf]
    %v984 = vld [vmem:[%s3 + $0x48] sm:$0xf]
    %v985 = vld [vmem:[%s3 + $0x4c] sm:$0xf]
    %v986 = vld [vmem:[%s3 + $0x50] sm:$0xf]
    %v987 = vld [vmem:[%s3 + $0x54] sm:$0xf]
    %v988 = vld [vmem:[%s3 + $0x58] sm:$0xf]
    %v989 = vld [vmem:[%s3 + $0x5c] sm:$0xf]
    %v990 = vld [vmem:[%s3 + $0x60] sm:$0xf]
    %v991 = vld [vmem:[%s3 + $0x64] sm:$0xf]
    %v992 = vld [vmem:[%s3 + $0x68] sm:$0xf]
    %v993 = vld [vmem:[%s3 + $0x6c] sm:$0xf]
    %v1006 = vunpack.c.l.b16 %v982
    %v1007 = vunpack.c.l.b16 %v983
    %v1008 = vunpack.c.l.b16 %v984
    %v1009 = vunpack.c.l.b16 %v985
    %v1010 = vunpack.c.l.b16 %v986
    %v1011 = vunpack.c.l.b16 %v987
    %v1012 = vunpack.c.l.b16 %v988
    %v1013 = vunpack.c.l.b16 %v989
    %v1014 = vunpack.c.l.b16 %v990
    %v1015 = vunpack.c.l.b16 %v991
    %v1016 = vunpack.c.l.b16 %v992
    %v1017 = vunpack.c.l.b16 %v993
    %v1018 = vpack.c.b16 %v1007, %v1006
    %v1019 = vpack.c.b16 %v1009, %v1008
    %v1020 = vpack.c.b16 %v1011, %v1010
    %v1021 = vpack.c.b16 %v1013, %v1012
    %v1022 = vpack.c.b16 %v1015, %v1014
    %v1023 = vpack.c.b16 %v1017, %v1016
    %v1028 = vunpack.c.l.b16 %v978
    %v1029 = vunpack.c.l.b16 %v979
    %v1030 = vunpack.c.l.b16 %v980
    %v1031 = vunpack.c.l.b16 %v981
    %v1032 = vpack.c.b16 %v1029, %v1028
    %v1033 = vpack.c.b16 %v1031, %v1030
    %v1037 = vsel %vm687, %v1018, 0
    %v1040 = vsel %vm687, %v1019, 0
    %v1043 = vsel %vm687, %v1020, 0
    %v1046 = vsel %vm687, %v1021, 0
    %v1049 = vsel %vm687, %v1022, 0
    %v1052 = vsel %vm687, %v1023, 0
    %1054 = vmatpush.bf16.msra.mxu0 0
    %1055 = vmatpush.bf16.msra.mxu0 0
    %1056 = vmatpush.bf16.msra.mxu0 0
    %1057 = vmatpush.bf16.msra.mxu0 0
    %1058 = vmatpush.bf16.msra.mxu0 0
    %1059 = vmatpush.bf16.msra.mxu0 0
    %1060 = vmatpush.bf16.msra.mxu0 %v1033
    %1061 = vmatpush.bf16.msra.mxu0 %v1032
    %1062 = vmatmul.bf16.gmra.mxu0 %v1037
    %v1063 = vpop.f32.mrf.mxu0
    %v1064 = vadd.f32 0.0, %v1063
    %v1065 = vpop.f32.mrf.mxu0
    %v1066 = vadd.f32 0.0, %v1065
    %1067 = vmatmul.bf16.gmra.mxu0 %v1040
    %v1068 = vpop.f32.mrf.mxu0
    %v1069 = vadd.f32 0.0, %v1068
    %v1070 = vpop.f32.mrf.mxu0
    %v1071 = vadd.f32 0.0, %v1070
    %1072 = vmatmul.bf16.gmra.mxu0 %v1043
    %v1073 = vpop.f32.mrf.mxu0
    %v1074 = vadd.f32 0.0, %v1073
    %v1075 = vpop.f32.mrf.mxu0
    %v1076 = vadd.f32 0.0, %v1075
    %1077 = vmatmul.bf16.gmra.mxu0 %v1046
    %v1078 = vpop.f32.mrf.mxu0
    %v1079 = vadd.f32 0.0, %v1078
    %v1080 = vpop.f32.mrf.mxu0
    %v1081 = vadd.f32 0.0, %v1080
    %1082 = vmatmul.bf16.gmra.mxu0 %v1049
    %v1083 = vpop.f32.mrf.mxu0
    %v1084 = vadd.f32 0.0, %v1083
    %v1085 = vpop.f32.mrf.mxu0
    %v1086 = vadd.f32 0.0, %v1085
    %1087 = vmatmul.bf16.gmra.mxu0 %v1052
    %v1088 = vpop.f32.mrf.mxu0
    %v1089 = vadd.f32 0.0, %v1088
    %v1090 = vpop.f32.mrf.mxu0
    %v1091 = vadd.f32 0.0, %v1090
    %1092 = vdwg.mxu0
    %v1093 = vpack.c.bf16 %v1064, %v1064
    %v1094 = vpack.c.bf16 %v1066, %v1066
    %v1095 = vpack.c.bf16 %v1069, %v1069
    %v1096 = vpack.c.bf16 %v1071, %v1071
    %v1097 = vpack.c.bf16 %v1074, %v1074
    %v1098 = vpack.c.bf16 %v1076, %v1076
    %v1099 = vpack.c.bf16 %v1079, %v1079
    %v1100 = vpack.c.bf16 %v1081, %v1081
    %v1101 = vpack.c.bf16 %v1084, %v1084
    %v1102 = vpack.c.bf16 %v1086, %v1086
    %v1103 = vpack.c.bf16 %v1089, %v1089
    %v1104 = vpack.c.bf16 %v1091, %v1091
    %v1105 = vunpack.c.l.bf16 %v605
    %v1106 = vunpack.c.l.bf16 %v606
    %v1107 = vunpack.c.l.bf16 %v607
    %v1108 = vunpack.c.l.bf16 %v608
    %v1109 = vunpack.c.l.bf16 %v1093
    %v1110 = vunpack.c.l.bf16 %v1094
    %v1111 = vunpack.c.l.bf16 %v1095
    %v1112 = vunpack.c.l.bf16 %v1096
    %v1113 = vadd.f32 %v1105, %v1109
    %v1114 = vadd.f32 %v1106, %v1110
    %v1115 = vadd.f32 %v1107, %v1111
    %v1116 = vadd.f32 %v1108, %v1112
    %v1117 = vpack.c.bf16 %v1113, %v1113
    %v1118 = vpack.c.bf16 %v1114, %v1114
    %v1119 = vpack.c.bf16 %v1115, %v1115
    %v1120 = vpack.c.bf16 %v1116, %v1116
    %v1121 = vunpack.c.l.bf16 %v1117
    %v1122 = vunpack.c.l.bf16 %v1118
    %v1123 = vunpack.c.l.bf16 %v1119
    %v1124 = vunpack.c.l.bf16 %v1120
    %v1125 = vtanh.pop %v1121
    %v1126 = vtanh.pop %v1122
    %v1127 = vtanh.pop %v1123
    %v1128 = vtanh.pop %v1124
    %v1129 = vpack.c.bf16 %v1125, %v1125
    %v1130 = vpack.c.bf16 %v1126, %v1126
    %v1131 = vpack.c.bf16 %v1127, %v1127
    %v1132 = vpack.c.bf16 %v1128, %v1128
    %v1133 = vunpack.c.l.bf16 %v609
    %v1134 = vunpack.c.l.bf16 %v610
    %v1135 = vunpack.c.l.bf16 %v611
    %v1136 = vunpack.c.l.bf16 %v612
    %v1137 = vunpack.c.l.bf16 %v1097
    %v1138 = vunpack.c.l.bf16 %v1098
    %v1139 = vunpack.c.l.bf16 %v1099
    %v1140 = vunpack.c.l.bf16 %v1100
    %v1141 = vadd.f32 %v1133, %v1137
    %v1142 = vadd.f32 %v1134, %v1138
    %v1143 = vadd.f32 %v1135, %v1139
    %v1144 = vadd.f32 %v1136, %v1140
    %v1145 = vpack.c.bf16 %v1141, %v1141
    %v1146 = vpack.c.bf16 %v1142, %v1142
    %v1147 = vpack.c.bf16 %v1143, %v1143
    %v1148 = vpack.c.bf16 %v1144, %v1144
    %v1149 = vunpack.c.l.bf16 %v1145
    %v1150 = vunpack.c.l.bf16 %v1146
    %v1151 = vunpack.c.l.bf16 %v1147
    %v1152 = vunpack.c.l.bf16 %v1148
    %v1153 = vtanh.pop %v1149
    %v1154 = vtanh.pop %v1150
    %v1155 = vtanh.pop %v1151
    %v1156 = vtanh.pop %v1152
    %v1157 = vpack.c.bf16 %v1153, %v1153
    %v1158 = vpack.c.bf16 %v1154, %v1154
    %v1159 = vpack.c.bf16 %v1155, %v1155
    %v1160 = vpack.c.bf16 %v1156, %v1156
    %v1161 = vunpack.c.l.bf16 %v613
    %v1162 = vunpack.c.l.bf16 %v614
    %v1163 = vunpack.c.l.bf16 %v615
    %v1164 = vunpack.c.l.bf16 %v616
    %v1165 = vunpack.c.l.bf16 %v1101
    %v1166 = vunpack.c.l.bf16 %v1102
    %v1167 = vunpack.c.l.bf16 %v1103
    %v1168 = vunpack.c.l.bf16 %v1104
    %v1169 = vadd.f32 %v1161, %v1165
    %v1170 = vadd.f32 %v1162, %v1166
    %v1171 = vadd.f32 %v1163, %v1167
    %v1172 = vadd.f32 %v1164, %v1168
    %v1173 = vpack.c.bf16 %v1169, %v1169
    %v1174 = vpack.c.bf16 %v1170, %v1170
    %v1175 = vpack.c.bf16 %v1171, %v1171
    %v1176 = vpack.c.bf16 %v1172, %v1172
    %v1177 = vunpack.c.l.bf16 %v1173
    %v1178 = vunpack.c.l.bf16 %v1174
    %v1179 = vunpack.c.l.bf16 %v1175
    %v1180 = vunpack.c.l.bf16 %v1176
    %v1181 = vtanh.pop %v1177
    %v1182 = vtanh.pop %v1178
    %v1183 = vtanh.pop %v1179
    %v1184 = vtanh.pop %v1180
    %v1185 = vpack.c.bf16 %v1181, %v1181
    %v1186 = vpack.c.bf16 %v1182, %v1182
    %v1187 = vpack.c.bf16 %v1183, %v1183
    %v1188 = vpack.c.bf16 %v1184, %v1184
    %v1189 = vld [vmem:[%s3 + $0x70] sm:$0xf]
    %v1190 = vld [vmem:[%s3 + $0x74] sm:$0xf]
    %v1191 = vld [vmem:[%s3 + $0x78] sm:$0xf]
    %v1192 = vld [vmem:[%s3 + $0x7c] sm:$0xf]
    %v1193 = vunpack.c.l.bf16 %v978
    %v1194 = vunpack.c.l.bf16 %v979
    %v1195 = vunpack.c.l.bf16 %v980
    %v1196 = vunpack.c.l.bf16 %v981
    %v1197 = vunpack.c.l.bf16 %v1185
    %v1198 = vunpack.c.l.bf16 %v1186
    %v1199 = vunpack.c.l.bf16 %v1187
    %v1200 = vunpack.c.l.bf16 %v1188
    %v1201 = vmul.f32 %v1193, %v1197
    %v1202 = vmul.f32 %v1194, %v1198
    %v1203 = vmul.f32 %v1195, %v1199
    %v1204 = vmul.f32 %v1196, %v1200
    %v1205 = vpack.c.bf16 %v1202, %v1201
    %v1206 = vpack.c.bf16 %v1204, %v1203
    %v1211 = vunpack.c.l.b16 %v1189
    %v1212 = vunpack.c.l.b16 %v1190
    %v1213 = vunpack.c.l.b16 %v1191
    %v1214 = vunpack.c.l.b16 %v1192
    %v1215 = vpack.c.b16 %v1212, %v1211
    %v1216 = vpack.c.b16 %v1214, %v1213
    %v1218 = vsel %vm687, %v1215, 0
    %v1221 = vsel %vm687, %v1216, 0
    %1223 = vmatpush.bf16.msra.mxu0 0
    %1224 = vmatpush.bf16.msra.mxu0 0
    %1225 = vmatpush.bf16.msra.mxu0 0
    %1226 = vmatpush.bf16.msra.mxu0 0
    %1227 = vmatpush.bf16.msra.mxu0 0
    %1228 = vmatpush.bf16.msra.mxu0 0
    %1229 = vmatpush.bf16.msra.mxu0 %v1206
    %1230 = vmatpush.bf16.msra.mxu0 %v1205
    %1231 = vmatmul.bf16.gmra.mxu0 %v1218
    %v1232 = vpop.f32.mrf.mxu0
    %v1233 = vadd.f32 0.0, %v1232
    %v1234 = vpop.f32.mrf.mxu0
    %v1235 = vadd.f32 0.0, %v1234
    %1236 = vmatmul.bf16.gmra.mxu0 %v1221
    %v1237 = vpop.f32.mrf.mxu0
    %v1238 = vadd.f32 0.0, %v1237
    %v1239 = vpop.f32.mrf.mxu0
    %v1240 = vadd.f32 0.0, %v1239
    %1241 = vdwg.mxu0
    %v1242 = vpack.c.bf16 %v1233, %v1233
    %v1243 = vpack.c.bf16 %v1235, %v1235
    %v1244 = vpack.c.bf16 %v1238, %v1238
    %v1245 = vpack.c.bf16 %v1240, %v1240
    %v1246 = vunpack.c.l.bf16 %v617
    %v1247 = vunpack.c.l.bf16 %v618
    %v1248 = vunpack.c.l.bf16 %v619
    %v1249 = vunpack.c.l.bf16 %v620
    %v1250 = vunpack.c.l.bf16 %v1242
    %v1251 = vunpack.c.l.bf16 %v1243
    %v1252 = vunpack.c.l.bf16 %v1244
    %v1253 = vunpack.c.l.bf16 %v1245
    %v1254 = vadd.f32 %v1246, %v1250
    %v1255 = vadd.f32 %v1247, %v1251
    %v1256 = vadd.f32 %v1248, %v1252
    %v1257 = vadd.f32 %v1249, %v1253
    %v1258 = vpack.c.bf16 %v1254, %v1254
    %v1259 = vpack.c.bf16 %v1255, %v1255
    %v1260 = vpack.c.bf16 %v1256, %v1256
    %v1261 = vpack.c.bf16 %v1257, %v1257
    %v1262 = vunpack.c.l.bf16 %v1258
    %v1263 = vunpack.c.l.bf16 %v1259
    %v1264 = vunpack.c.l.bf16 %v1260
    %v1265 = vunpack.c.l.bf16 %v1261
    %v1266 = vtanh.pop %v1262
    %v1267 = vtanh.pop %v1263
    %v1268 = vtanh.pop %v1264
    %v1269 = vtanh.pop %v1265
    %v1270 = vpack.c.bf16 %v1266, %v1266
    %v1271 = vpack.c.bf16 %v1267, %v1267
    %v1272 = vpack.c.bf16 %v1268, %v1268
    %v1273 = vpack.c.bf16 %v1269, %v1269
    %v1274 = vunpack.c.l.bf16 %v1129
    %v1275 = vunpack.c.l.bf16 %v1130
    %v1276 = vunpack.c.l.bf16 %v1131
    %v1277 = vunpack.c.l.bf16 %v1132
    %v1278 = vsub.f32 1.0, %v1274
    %v1279 = vsub.f32 1.0, %v1275
    %v1280 = vsub.f32 1.0, %v1276
    %v1281 = vsub.f32 1.0, %v1277
    %v1282 = vpack.c.bf16 %v1278, %v1278
    %v1283 = vpack.c.bf16 %v1279, %v1279
    %v1284 = vpack.c.bf16 %v1280, %v1280
    %v1285 = vpack.c.bf16 %v1281, %v1281
    %v1286 = vunpack.c.l.bf16 %v1282
    %v1287 = vunpack.c.l.bf16 %v1283
    %v1288 = vunpack.c.l.bf16 %v1284
    %v1289 = vunpack.c.l.bf16 %v1285
    %v1290 = vunpack.c.l.bf16 %v1270
    %v1291 = vunpack.c.l.bf16 %v1271
    %v1292 = vunpack.c.l.bf16 %v1272
    %v1293 = vunpack.c.l.bf16 %v1273
    %v1294 = vmul.f32 %v1286, %v1290
    %v1295 = vmul.f32 %v1287, %v1291
    %v1296 = vmul.f32 %v1288, %v1292
    %v1297 = vmul.f32 %v1289, %v1293
    %v1298 = vpack.c.bf16 %v1294, %v1294
    %v1299 = vpack.c.bf16 %v1295, %v1295
    %v1300 = vpack.c.bf16 %v1296, %v1296
    %v1301 = vpack.c.bf16 %v1297, %v1297
    %v1302 = vunpack.c.l.bf16 %v1157
    %v1303 = vunpack.c.l.bf16 %v1158
    %v1304 = vunpack.c.l.bf16 %v1159
    %v1305 = vunpack.c.l.bf16 %v1160
    %v1306 = vmul.f32 %v1302, %v1193
    %v1307 = vmul.f32 %v1303, %v1194
    %v1308 = vmul.f32 %v1304, %v1195
    %v1309 = vmul.f32 %v1305, %v1196
    %v1310 = vpack.c.bf16 %v1306, %v1306
    %v1311 = vpack.c.bf16 %v1307, %v1307
    %v1312 = vpack.c.bf16 %v1308, %v1308
    %v1313 = vpack.c.bf16 %v1309, %v1309
    %v1314 = vunpack.c.l.bf16 %v1298
    %v1315 = vunpack.c.l.bf16 %v1299
    %v1316 = vunpack.c.l.bf16 %v1300
    %v1317 = vunpack.c.l.bf16 %v1301
    %v1318 = vunpack.c.l.bf16 %v1310
    %v1319 = vunpack.c.l.bf16 %v1311
    %v1320 = vunpack.c.l.bf16 %v1312
    %v1321 = vunpack.c.l.bf16 %v1313
    %v1322 = vadd.f32 %v1314, %v1318
    %v1323 = vadd.f32 %v1315, %v1319
    %v1324 = vadd.f32 %v1316, %v1320
    %v1325 = vadd.f32 %v1317, %v1321
    %v1326 = vpack.c.bf16 %v1322, %v1322
    %v1327 = vpack.c.bf16 %v1323, %v1323
    %v1328 = vpack.c.bf16 %v1324, %v1324
    %v1329 = vpack.c.bf16 %v1325, %v1325
    %v1330 = vunpack.c.l.bf16 %v1326
    %v1331 = vunpack.c.l.bf16 %v1327
    %v1332 = vunpack.c.l.bf16 %v1328
    %v1333 = vunpack.c.l.bf16 %v1329
    %v1334 = vld [vmem:[%s4] sm:$0xff]
    %v1335 = vld [vmem:[%s4 + $0x8] sm:$0xff]
    %v1336 = vld [vmem:[%s4 + $0x10] sm:$0xff]
    %v1337 = vld [vmem:[%s4 + $0x18] sm:$0xff]
    %1339 = vset.pattern.permute.xlu0 0
    %1340 = vperm.xlu0 %1339, %v1334
    %v1341 = vpop.permute.xlu0 %1340
    %1344 = vset.pattern.permute.xlu0 0
    %1345 = vperm.xlu0 %1344, %v1335
    %v1346 = vpop.permute.xlu0 %1345
    %1349 = vset.pattern.permute.xlu0 0
    %1350 = vperm.xlu0 %1349, %v1336
    %v1351 = vpop.permute.xlu0 %1350
    %1354 = vset.pattern.permute.xlu0 0
    %1355 = vperm.xlu0 %1354, %v1337
    %v1356 = vpop.permute.xlu0 %1355
    %v1358 = vmul.f32 %v1330, %v1341
    %v1359 = vmul.f32 %v1331, %v1346
    %v1360 = vmul.f32 %v1332, %v1351
    %v1361 = vmul.f32 %v1333, %v1356
    %v1362 = vadd.f32 %v1358, %v1359
    %v1363 = vadd.f32 %v1362, %v1360
    %v1364 = vadd.f32 %v1363, %v1361
    %v1365 = vrot.slane %v1364, 4
    %v1366 = vadd.f32 %v1364, %v1365
    %v1367 = vrot.slane %v1366, 2
    %v1368 = vadd.f32 %v1366, %v1367
    %v1369 = vrot.slane %v1368, 1
    %v1370 = vadd.f32 %v1368, %v1369
    %v1371 = vmul.f32 %v1370, 0.5
    %vm1372 = vcmp.gt.f32.partialorder %v1371, 20.0
    %v1373 = vmul.f32 %v1371, 1.442695
    %v1374 = vpow.pop %v1373
    %v1375 = vadd.f32 %v1374, 1.0
    %v1376 = vlog2.pop %v1375
    %v1377 = vmul.f32 %v1376, 0.6931472
    %v1378 = vmul.f32 %v1377, 2.0
    %v1379 = vsel %vm1372, %v1370, %v1378
    %v1380 = vmul.f32 %v1379, 0.05
    %v1381 = vmul.f32 %v81, %v39
    %v1382 = vmul.f32 %v1381, 5.0
    %v1383 = vsub.f32 %v1382, 4.8765497
    %v1384 = vxor.u32 %v1383, 2147483648
    %v1385 = vmul.f32 %v1384, 1.442695
    %v1386 = vpow.pop %v1385
    %v1387 = vadd.f32 %v1386, 1.0
    %v1388 = vrcp.pop %v1387
    %v1389 = vmul.f32 %v1387, %v1388
    %v1390 = vsub.f32 1.0, %v1389
    %v1391 = vmul.f32 %v1388, %v1390
    %v1392 = vadd.f32 %v1388, %v1391
    %vm1393 = vweird.f32 %v1387
    %vm1394 = vweird.f32 %v1388
    %vm1395 = vmor %vm1393, %vm1394
    %v1396 = vsel %vm1395, %v1388, %v1392
    %v1397 = vand.u32 2147483647, %v1387
    %vm1398 = vcmp.eq.f32.partialorder %v1397, 8.507059e+37
    %v1399 = vand.u32 %v1387, 2147483648
    %v1400 = vor.u32 1.1754944e-38, %v1399
    %v1401 = vsel %vm1398, %v1400, %v1396
    %v1402 = vmul.f32 1.0, %v1401
    %v1403 = vmul.f32 %v1402, 0.024690088
    %v1404 = vsub.f32 %v1381, 1.0
    %v1405 = vmax.f32 %v1404, 0.0
    %v1406 = vadd.f32 %v1405, %v1403
    %v1407 = vsub.f32 1.0, %v81
    %v1408 = vmul.f32 %v1407, %v39
    %v1409 = vadd.f32 %v1380, %v1406
    %v1410 = vadd.f32 %v1409, %v1408
    %1411 = vst [vmem:[#allocation2] sm:$0x1] %v1410
    // Predicated region
    $region22: #{tpu_custom_call.1} parent=1 // pred_check
      _
    $region23: #{tpu_custom_call.1} parent=1 // pred_check_branch
      %1413 = sbr.rel (0) target = $region25
    $region24: #{tpu_custom_call.1} parent=1 // pred_region
      %1415 = vsyncadd [#allocation3], 0
      %s1417 = sshll.u32 [#allocation2], 4
      %s1418 = int_to_ptr.vmem [resolvable:$true] %s1417
      %s1419 = sshll.u32 %s5, 4
      %s1420 = int_to_ptr.hbm [resolvable:$true] %s1419
      %1422 = dma.vmem_to_hbm [thread:$0]  %s1418, 16, %s1420, [#allocation3]
    $region25: #{tpu_custom_call.1} parent=1 // pred_fallthru
      _
    // Predicated region
    $region26: #{tpu_custom_call.1} parent=1 // pred_check
      _
    $region27: #{tpu_custom_call.1} parent=1 // pred_check_branch
      %1424 = sbr.rel (0) target = $region29
    $region28: #{tpu_custom_call.1} parent=1 // pred_region
      %1426 = dma.done [#allocation3], 16
    $region29: #{tpu_custom_call.1} parent=1 // pred_fallthru
      _
    %1427 = vsyncpa [#allocation3], 1

</llo_original>
